<compile_context>
chip_gen: v6e
topology: v6e:2x2x1
jax: 0.10.0
libtpu: 0.0.40
codegen_flags: <defaults>
</compile_context>

<pallas_src>
import jax
import jax.numpy as jnp
from jax.experimental import pallas as pl
from jax.experimental.pallas import tpu as pltpu

EPS = 1e-5
H = 28             # spatial height (from the module's input)
W = 28             # spatial width
HW = H * W         # 784: flattened spatial size (compact, lane axis)
CG = 8             # channels per sublane group (C = 24 -> 3 groups)
BASE = 128         # lane offset of the real data inside the haloed scratch
PADW = 1024        # haloed scratch lane width (8 * 128)
CW = HW + 2 * W    # 840: width of the column-shifted working domain
MASKW = 896        # column-mask input width (7 * 128 >= CW + 1)


def _relu_dwconv_bn_kernel(x_ref, w_ref, gamma_ref, beta_ref, mask_ref,
                           o_ref, pad_ref):
    """relu -> depthwise 3x3 conv (pad=1) -> batchnorm, per 8-channel group.

    x_ref:     (N, C, HW)     compact input, rows flattened on lanes (stride W)
    w_ref:     (C, 9)         depthwise weights, tap index = kh*3 + kw
    gamma_ref: (C, 1)         BN scale
    beta_ref:  (C, 1)         BN shift
    mask_ref:  (1, 1, MASKW)  M[r] = 0.0 if r % W == 0 else 1.0
    o_ref:     (N, C, HW)     output, compact layout
    pad_ref:   (N, CG, PADW)  zero-haloed per-group scratch, data in [BASE, BASE+HW)
    """
    N, C, _ = o_ref.shape
    inv_m = 1.0 / float(N * HW)

    # Column-validity masks on the shifted working domain (r = p + kh*W):
    #   m0 kills taps reading column w-1 when w == 0
    #   m2 kills taps reading column w+1 when w == W-1
    m_all = mask_ref[...]
    m0 = m_all[:, :, 0:CW]
    m2 = m_all[:, :, 1:CW + 1]

    # Zero the halo once.  Only the data window [BASE, BASE+HW) is rewritten per
    # group, so the halo stays zero for every group.
    pad_ref[...] = jnp.zeros_like(pad_ref)

    for g in range(C // CG):
        cs = slice(g * CG, (g + 1) * CG)

        # ReLU fused into the halo-buffer fill (relu(0) == 0 keeps halo intact).
        pad_ref[:, :, BASE:BASE + HW] = jnp.maximum(x_ref[:, cs, :], 0.0)
        xg = pad_ref[...]                                    # (N, CG, PADW)
        wg = w_ref[cs, :]                                    # (CG, 9)

        # 3 column-shifted copies (kw = 0,1,2) on the widened domain; the two
        # off-center copies get the column-validity mask folded in once.
        s0 = BASE - W - 1                                    # 99
        c0 = xg[:, :, s0 + 0:s0 + 0 + CW] * m0               # reads column w-1
        c1 = xg[:, :, s0 + 1:s0 + 1 + CW]                    # reads column w
        c2 = xg[:, :, s0 + 2:s0 + 2 + CW] * m2               # reads column w+1

        # Row factoring: d_kh = sum_kw c_kw * wt[kh,kw]; slice at kh*W and add.
        acc = None
        for kh in range(3):
            d = (c0 * wg[:, 3 * kh + 0:3 * kh + 1]
                 + c1 * wg[:, 3 * kh + 1:3 * kh + 2]
                 + c2 * wg[:, 3 * kh + 2:3 * kh + 3])        # (N, CG, CW)
            term = d[:, :, kh * W:kh * W + HW]               # (N, CG, HW)
            acc = term if acc is None else acc + term

        # BatchNorm (training-mode batch stats).  Stats are per-channel and each
        # channel lives entirely inside this group, so per-group is exact.
        s = jnp.sum(acc, axis=(0, 2), keepdims=True)          # (1, CG, 1)
        ss = jnp.sum(acc * acc, axis=(0, 2), keepdims=True)   # (1, CG, 1)
        mean = s * inv_m
        var = ss * inv_m - mean * mean                        # biased variance
        inv_std = jax.lax.rsqrt(var + EPS)
        a = gamma_ref[cs, :] * inv_std                        # (1, CG, 1)
        b = beta_ref[cs, :] - mean * a
        o_ref[:, cs, :] = (acc * a + b).astype(o_ref.dtype)


def relu_dwconv_bn(x_nchw, w_dw, gamma, beta):
    """x_nchw: (N, C, 28, 28) f32; w_dw: (C, 1, 3, 3); gamma/beta: (C,)."""
    N, C, h, w = x_nchw.shape
    assert (h, w) == (H, W), "kernel is specialized to the module's 28x28 input"
    assert C % CG == 0

    # Free (contiguous) reshapes only — no pad / slice launches around the call.
    x_flat = x_nchw.reshape(N, C, HW)
    w_taps = w_dw.reshape(C, 9)             # tap index = kh*3 + kw
    gamma2 = gamma.reshape(C, 1)
    beta2 = beta.reshape(C, 1)

    # Column-validity mask (input-independent constant -> folded under jit).
    r = jnp.arange(MASKW, dtype=jnp.int32)
    mask = (r % W != 0).astype(jnp.float32).reshape(1, 1, MASKW)

    vmem = pl.BlockSpec(memory_space=pltpu.MemorySpace.VMEM)
    bytes_in = 4 * (N * C * HW + C * 9 + 2 * C + MASKW)
    bytes_out = 4 * N * C * HW
    cost = pl.CostEstimate(
        flops=(2 * 9 + 8) * N * C * HW,     # conv + BN stats/apply
        transcendentals=C,                  # one rsqrt per channel
        bytes_accessed=bytes_in + bytes_out,
    )

    out_flat = pl.pallas_call(
        _relu_dwconv_bn_kernel,
        out_shape=jax.ShapeDtypeStruct((N, C, HW), x_nchw.dtype),
        in_specs=[vmem, vmem, vmem, vmem, vmem],
        out_specs=vmem,
        scratch_shapes=[pltpu.VMEM((N, CG, PADW), jnp.float32)],
        cost_estimate=cost,
    )(x_flat, w_taps, gamma2, beta2, mask)

    return out_flat.reshape(N, C, H, W)


relu_dwconv_bn_jit = jax.jit(relu_dwconv_bn)


def _reference(x_nchw, w_dw, gamma, beta):
    """Pure-JAX reference (relu -> depthwise conv -> training-mode BN)."""
    xr = jnp.maximum(x_nchw, 0.0)
    y = jax.lax.conv_general_dilated(
        xr, w_dw, window_strides=(1, 1), padding=((1, 1), (1, 1)),
        dimension_numbers=("NCHW", "OIHW", "NCHW"),
        feature_group_count=x_nchw.shape[1])
    mean = jnp.mean(y, axis=(0, 2, 3), keepdims=True)
    var = jnp.mean((y - mean) ** 2, axis=(0, 2, 3), keepdims=True)
    g = gamma.reshape(1, -1, 1, 1)
    b = beta.reshape(1, -1, 1, 1)
    return (y - mean) / jnp.sqrt(var + EPS) * g + b


if __name__ == "__main__":
    key = jax.random.PRNGKey(0)
    k_x, k_w, k_g, k_b = jax.random.split(key, 4)

    N, C = 1, 24                                     # matches the module's (1, 24, 28, 28)
    x = jax.random.normal(k_x, (N, C, H, W), dtype=jnp.float32)

    # Deterministic parameter init (depthwise conv weight (C,1,3,3), BN affine).
    w_dw = jax.random.normal(k_w, (C, 1, 3, 3), dtype=jnp.float32) * 0.1
    gamma = 1.0 + 0.05 * jax.random.normal(k_g, (C,), dtype=jnp.float32)
    beta = 0.05 * jax.random.normal(k_b, (C,), dtype=jnp.float32)

    out = jax.block_until_ready(relu_dwconv_bn_jit(x, w_dw, gamma, beta))
    ref = jax.block_until_ready(_reference(x, w_dw, gamma, beta))

    assert out.shape == (N, C, H, W)
    err = float(jnp.max(jnp.abs(out - ref)))
    assert err < 1e-4, f"mismatch vs reference: {err}"

    print("KERNEL_OK")
</pallas_src>

<mosaic_0001>
module attributes {stable_mosaic.version = 11 : i64} {
  func.func @_relu_dwconv_bn_kernel(%arg0: memref<1x24x784xf32, #tpu.memory_space<vmem>>, %arg1: memref<24x9xf32, #tpu.memory_space<vmem>>, %arg2: memref<24x1xf32, #tpu.memory_space<vmem>>, %arg3: memref<24x1xf32, #tpu.memory_space<vmem>>, %arg4: memref<1x1x896xf32, #tpu.memory_space<vmem>>, %arg5: memref<1x24x784xf32, #tpu.memory_space<vmem>>, %arg6: memref<1x8x1024xf32, #tpu.memory_space<vmem>>) attributes {dimension_semantics = [], scalar_prefetch = 0 : i64, scratch_operands = 1 : i64, tpu.core_type = #tpu.core_type<tc>} {
    %c0 = arith.constant 0 : index
    %c0_0 = arith.constant 0 : index
    %c0_1 = arith.constant 0 : index
    %0 = vector.load %arg4[%c0, %c0_0, %c0_1] : memref<1x1x896xf32, #tpu.memory_space<vmem>>, vector<1x1x896xf32>
    %1 = vector.extract_strided_slice %0 {offsets = [0, 0, 0], sizes = [1, 1, 840], strides = [1, 1, 1]} : vector<1x1x896xf32> to vector<1x1x840xf32>
    %2 = vector.extract_strided_slice %0 {offsets = [0, 0, 1], sizes = [1, 1, 840], strides = [1, 1, 1]} : vector<1x1x896xf32> to vector<1x1x840xf32>
    %cst = arith.constant 0.000000e+00 : f32
    %3 = vector.broadcast %cst : f32 to vector<1x8x1024xf32>
    %c0_2 = arith.constant 0 : index
    %c0_3 = arith.constant 0 : index
    %c0_4 = arith.constant 0 : index
    %4 = vector.load %arg6[%c0_2, %c0_3, %c0_4] : memref<1x8x1024xf32, #tpu.memory_space<vmem>>, vector<1x8x1024xf32>
    tpu.vector_store %arg6[%c0_2, %c0_3, %c0_4], %3 {strides = array<i32>} : memref<1x8x1024xf32, #tpu.memory_space<vmem>>, vector<1x8x1024xf32>,
    %c0_5 = arith.constant 0 : index
    %c0_6 = arith.constant 0 : index
    %c0_7 = arith.constant 0 : index
    %5 = vector.load %arg0[%c0_5, %c0_6, %c0_7] : memref<1x24x784xf32, #tpu.memory_space<vmem>>, vector<1x8x784xf32>
    %cst_8 = arith.constant 0.000000e+00 : f32
    %6 = vector.broadcast %cst_8 : f32 to vector<1x8x784xf32>
    %7 = arith.maximumf %5, %6 : vector<1x8x784xf32>
    %c0_9 = arith.constant 0 : index
    %c0_10 = arith.constant 0 : index
    %c128 = arith.constant 128 : index
    %8 = vector.load %arg6[%c0_9, %c0_10, %c128] : memref<1x8x1024xf32, #tpu.memory_space<vmem>>, vector<1x8x784xf32>
    tpu.vector_store %arg6[%c0_9, %c0_10, %c128], %7 {strides = array<i32>} : memref<1x8x1024xf32, #tpu.memory_space<vmem>>, vector<1x8x784xf32>,
    %c0_11 = arith.constant 0 : index
    %c0_12 = arith.constant 0 : index
    %c0_13 = arith.constant 0 : index
    %9 = vector.load %arg6[%c0_11, %c0_12, %c0_13] : memref<1x8x1024xf32, #tpu.memory_space<vmem>>, vector<1x8x1024xf32>
    %c0_14 = arith.constant 0 : index
    %c0_15 = arith.constant 0 : index
    %10 = vector.load %arg1[%c0_14, %c0_15] : memref<24x9xf32, #tpu.memory_space<vmem>>, vector<8x9xf32>
    %11 = vector.extract_strided_slice %9 {offsets = [0, 0, 99], sizes = [1, 8, 840], strides = [1, 1, 1]} : vector<1x8x1024xf32> to vector<1x8x840xf32>
    %12 = vector.broadcast %1 : vector<1x1x840xf32> to vector<1x8x840xf32>
    %13 = arith.mulf %11, %12 : vector<1x8x840xf32>
    %14 = vector.extract_strided_slice %9 {offsets = [0, 0, 100], sizes = [1, 8, 840], strides = [1, 1, 1]} : vector<1x8x1024xf32> to vector<1x8x840xf32>
    %15 = vector.extract_strided_slice %9 {offsets = [0, 0, 101], sizes = [1, 8, 840], strides = [1, 1, 1]} : vector<1x8x1024xf32> to vector<1x8x840xf32>
    %16 = vector.broadcast %2 : vector<1x1x840xf32> to vector<1x8x840xf32>
    %17 = arith.mulf %15, %16 : vector<1x8x840xf32>
    %18 = vector.extract_strided_slice %10 {offsets = [0, 0], sizes = [8, 1], strides = [1, 1]} : vector<8x9xf32> to vector<8x1xf32>
    %19 = vector.shape_cast %18 : vector<8x1xf32> to vector<1x8x1xf32>
    %20 = vector.broadcast %19 : vector<1x8x1xf32> to vector<1x8x840xf32>
    %21 = arith.mulf %13, %20 : vector<1x8x840xf32>
    %22 = vector.extract_strided_slice %10 {offsets = [0, 1], sizes = [8, 1], strides = [1, 1]} : vector<8x9xf32> to vector<8x1xf32>
    %23 = vector.shape_cast %22 : vector<8x1xf32> to vector<1x8x1xf32>
    %24 = vector.broadcast %23 : vector<1x8x1xf32> to vector<1x8x840xf32>
    %25 = arith.mulf %14, %24 : vector<1x8x840xf32>
    %26 = arith.addf %21, %25 : vector<1x8x840xf32>
    %27 = vector.extract_strided_slice %10 {offsets = [0, 2], sizes = [8, 1], strides = [1, 1]} : vector<8x9xf32> to vector<8x1xf32>
    %28 = vector.shape_cast %27 : vector<8x1xf32> to vector<1x8x1xf32>
    %29 = vector.broadcast %28 : vector<1x8x1xf32> to vector<1x8x840xf32>
    %30 = arith.mulf %17, %29 : vector<1x8x840xf32>
    %31 = arith.addf %26, %30 : vector<1x8x840xf32>
    %32 = vector.extract_strided_slice %31 {offsets = [0, 0, 0], sizes = [1, 8, 784], strides = [1, 1, 1]} : vector<1x8x840xf32> to vector<1x8x784xf32>
    %33 = vector.extract_strided_slice %10 {offsets = [0, 3], sizes = [8, 1], strides = [1, 1]} : vector<8x9xf32> to vector<8x1xf32>
    %34 = vector.shape_cast %33 : vector<8x1xf32> to vector<1x8x1xf32>
    %35 = vector.broadcast %34 : vector<1x8x1xf32> to vector<1x8x840xf32>
    %36 = arith.mulf %13, %35 : vector<1x8x840xf32>
    %37 = vector.extract_strided_slice %10 {offsets = [0, 4], sizes = [8, 1], strides = [1, 1]} : vector<8x9xf32> to vector<8x1xf32>
    %38 = vector.shape_cast %37 : vector<8x1xf32> to vector<1x8x1xf32>
    %39 = vector.broadcast %38 : vector<1x8x1xf32> to vector<1x8x840xf32>
    %40 = arith.mulf %14, %39 : vector<1x8x840xf32>
    %41 = arith.addf %36, %40 : vector<1x8x840xf32>
    %42 = vector.extract_strided_slice %10 {offsets = [0, 5], sizes = [8, 1], strides = [1, 1]} : vector<8x9xf32> to vector<8x1xf32>
    %43 = vector.shape_cast %42 : vector<8x1xf32> to vector<1x8x1xf32>
    %44 = vector.broadcast %43 : vector<1x8x1xf32> to vector<1x8x840xf32>
    %45 = arith.mulf %17, %44 : vector<1x8x840xf32>
    %46 = arith.addf %41, %45 : vector<1x8x840xf32>
    %47 = vector.extract_strided_slice %46 {offsets = [0, 0, 28], sizes = [1, 8, 784], strides = [1, 1, 1]} : vector<1x8x840xf32> to vector<1x8x784xf32>
    %48 = arith.addf %32, %47 : vector<1x8x784xf32>
    %49 = vector.extract_strided_slice %10 {offsets = [0, 6], sizes = [8, 1], strides = [1, 1]} : vector<8x9xf32> to vector<8x1xf32>
    %50 = vector.shape_cast %49 : vector<8x1xf32> to vector<1x8x1xf32>
    %51 = vector.broadcast %50 : vector<1x8x1xf32> to vector<1x8x840xf32>
    %52 = arith.mulf %13, %51 : vector<1x8x840xf32>
    %53 = vector.extract_strided_slice %10 {offsets = [0, 7], sizes = [8, 1], strides = [1, 1]} : vector<8x9xf32> to vector<8x1xf32>
    %54 = vector.shape_cast %53 : vector<8x1xf32> to vector<1x8x1xf32>
    %55 = vector.broadcast %54 : vector<1x8x1xf32> to vector<1x8x840xf32>
    %56 = arith.mulf %14, %55 : vector<1x8x840xf32>
    %57 = arith.addf %52, %56 : vector<1x8x840xf32>
    %58 = vector.extract_strided_slice %10 {offsets = [0, 8], sizes = [8, 1], strides = [1, 1]} : vector<8x9xf32> to vector<8x1xf32>
    %59 = vector.shape_cast %58 : vector<8x1xf32> to vector<1x8x1xf32>
    %60 = vector.broadcast %59 : vector<1x8x1xf32> to vector<1x8x840xf32>
    %61 = arith.mulf %17, %60 : vector<1x8x840xf32>
    %62 = arith.addf %57, %61 : vector<1x8x840xf32>
    %63 = vector.extract_strided_slice %62 {offsets = [0, 0, 56], sizes = [1, 8, 784], strides = [1, 1, 1]} : vector<1x8x840xf32> to vector<1x8x784xf32>
    %64 = arith.addf %48, %63 : vector<1x8x784xf32>
    %cst_16 = arith.constant dense<0.000000e+00> : vector<8xf32>
    %65 = vector.multi_reduction <add>, %64, %cst_16 [0, 2] : vector<1x8x784xf32> to vector<8xf32>
    %66 = vector.shape_cast %65 : vector<8xf32> to vector<1x8x1xf32>
    %67 = arith.mulf %64, %64 : vector<1x8x784xf32>
    %cst_17 = arith.constant dense<0.000000e+00> : vector<8xf32>
    %68 = vector.multi_reduction <add>, %67, %cst_17 [0, 2] : vector<1x8x784xf32> to vector<8xf32>
    %69 = vector.shape_cast %68 : vector<8xf32> to vector<1x8x1xf32>
    %cst_18 = arith.constant 0.00127551018 : f32
    %70 = vector.broadcast %cst_18 : f32 to vector<1x8x1xf32>
    %71 = arith.mulf %66, %70 : vector<1x8x1xf32>
    %cst_19 = arith.constant 0.00127551018 : f32
    %72 = vector.broadcast %cst_19 : f32 to vector<1x8x1xf32>
    %73 = arith.mulf %69, %72 : vector<1x8x1xf32>
    %74 = arith.mulf %71, %71 : vector<1x8x1xf32>
    %75 = arith.subf %73, %74 : vector<1x8x1xf32>
    %cst_20 = arith.constant 9.99999974E-6 : f32
    %76 = vector.broadcast %cst_20 : f32 to vector<1x8x1xf32>
    %77 = arith.addf %75, %76 : vector<1x8x1xf32>
    %78 = math.rsqrt %77 : vector<1x8x1xf32>
    %c0_21 = arith.constant 0 : index
    %c0_22 = arith.constant 0 : index
    %79 = vector.load %arg2[%c0_21, %c0_22] : memref<24x1xf32, #tpu.memory_space<vmem>>, vector<8x1xf32>
    %80 = vector.shape_cast %79 : vector<8x1xf32> to vector<1x8x1xf32>
    %81 = arith.mulf %80, %78 : vector<1x8x1xf32>
    %c0_23 = arith.constant 0 : index
    %c0_24 = arith.constant 0 : index
    %82 = vector.load %arg3[%c0_23, %c0_24] : memref<24x1xf32, #tpu.memory_space<vmem>>, vector<8x1xf32>
    %83 = arith.mulf %71, %81 : vector<1x8x1xf32>
    %84 = vector.shape_cast %82 : vector<8x1xf32> to vector<1x8x1xf32>
    %85 = arith.subf %84, %83 : vector<1x8x1xf32>
    %86 = vector.broadcast %81 : vector<1x8x1xf32> to vector<1x8x784xf32>
    %87 = arith.mulf %64, %86 : vector<1x8x784xf32>
    %88 = vector.broadcast %85 : vector<1x8x1xf32> to vector<1x8x784xf32>
    %89 = arith.addf %87, %88 : vector<1x8x784xf32>
    %c0_25 = arith.constant 0 : index
    %c0_26 = arith.constant 0 : index
    %c0_27 = arith.constant 0 : index
    %90 = vector.load %arg5[%c0_25, %c0_26, %c0_27] : memref<1x24x784xf32, #tpu.memory_space<vmem>>, vector<1x8x784xf32>
    tpu.vector_store %arg5[%c0_25, %c0_26, %c0_27], %89 {strides = array<i32>} : memref<1x24x784xf32, #tpu.memory_space<vmem>>, vector<1x8x784xf32>,
    %c0_28 = arith.constant 0 : index
    %c8 = arith.constant 8 : index
    %c0_29 = arith.constant 0 : index
    %91 = vector.load %arg0[%c0_28, %c8, %c0_29] : memref<1x24x784xf32, #tpu.memory_space<vmem>>, vector<1x8x784xf32>
    %cst_30 = arith.constant 0.000000e+00 : f32
    %92 = vector.broadcast %cst_30 : f32 to vector<1x8x784xf32>
    %93 = arith.maximumf %91, %92 : vector<1x8x784xf32>
    %c0_31 = arith.constant 0 : index
    %c0_32 = arith.constant 0 : index
    %c128_33 = arith.constant 128 : index
    %94 = vector.load %arg6[%c0_31, %c0_32, %c128_33] : memref<1x8x1024xf32, #tpu.memory_space<vmem>>, vector<1x8x784xf32>
    tpu.vector_store %arg6[%c0_31, %c0_32, %c128_33], %93 {strides = array<i32>} : memref<1x8x1024xf32, #tpu.memory_space<vmem>>, vector<1x8x784xf32>,
    %c0_34 = arith.constant 0 : index
    %c0_35 = arith.constant 0 : index
    %c0_36 = arith.constant 0 : index
    %95 = vector.load %arg6[%c0_34, %c0_35, %c0_36] : memref<1x8x1024xf32, #tpu.memory_space<vmem>>, vector<1x8x1024xf32>
    %c8_37 = arith.constant 8 : index
    %c0_38 = arith.constant 0 : index
    %96 = vector.load %arg1[%c8_37, %c0_38] : memref<24x9xf32, #tpu.memory_space<vmem>>, vector<8x9xf32>
    %97 = vector.extract_strided_slice %95 {offsets = [0, 0, 99], sizes = [1, 8, 840], strides = [1, 1, 1]} : vector<1x8x1024xf32> to vector<1x8x840xf32>
    %98 = vector.broadcast %1 : vector<1x1x840xf32> to vector<1x8x840xf32>
    %99 = arith.mulf %97, %98 : vector<1x8x840xf32>
    %100 = vector.extract_strided_slice %95 {offsets = [0, 0, 100], sizes = [1, 8, 840], strides = [1, 1, 1]} : vector<1x8x1024xf32> to vector<1x8x840xf32>
    %101 = vector.extract_strided_slice %95 {offsets = [0, 0, 101], sizes = [1, 8, 840], strides = [1, 1, 1]} : vector<1x8x1024xf32> to vector<1x8x840xf32>
    %102 = vector.broadcast %2 : vector<1x1x840xf32> to vector<1x8x840xf32>
    %103 = arith.mulf %101, %102 : vector<1x8x840xf32>
    %104 = vector.extract_strided_slice %96 {offsets = [0, 0], sizes = [8, 1], strides = [1, 1]} : vector<8x9xf32> to vector<8x1xf32>
    %105 = vector.shape_cast %104 : vector<8x1xf32> to vector<1x8x1xf32>
    %106 = vector.broadcast %105 : vector<1x8x1xf32> to vector<1x8x840xf32>
    %107 = arith.mulf %99, %106 : vector<1x8x840xf32>
    %108 = vector.extract_strided_slice %96 {offsets = [0, 1], sizes = [8, 1], strides = [1, 1]} : vector<8x9xf32> to vector<8x1xf32>
    %109 = vector.shape_cast %108 : vector<8x1xf32> to vector<1x8x1xf32>
    %110 = vector.broadcast %109 : vector<1x8x1xf32> to vector<1x8x840xf32>
    %111 = arith.mulf %100, %110 : vector<1x8x840xf32>
    %112 = arith.addf %107, %111 : vector<1x8x840xf32>
    %113 = vector.extract_strided_slice %96 {offsets = [0, 2], sizes = [8, 1], strides = [1, 1]} : vector<8x9xf32> to vector<8x1xf32>
    %114 = vector.shape_cast %113 : vector<8x1xf32> to vector<1x8x1xf32>
    %115 = vector.broadcast %114 : vector<1x8x1xf32> to vector<1x8x840xf32>
    %116 = arith.mulf %103, %115 : vector<1x8x840xf32>
    %117 = arith.addf %112, %116 : vector<1x8x840xf32>
    %118 = vector.extract_strided_slice %117 {offsets = [0, 0, 0], sizes = [1, 8, 784], strides = [1, 1, 1]} : vector<1x8x840xf32> to vector<1x8x784xf32>
    %119 = vector.extract_strided_slice %96 {offsets = [0, 3], sizes = [8, 1], strides = [1, 1]} : vector<8x9xf32> to vector<8x1xf32>
    %120 = vector.shape_cast %119 : vector<8x1xf32> to vector<1x8x1xf32>
    %121 = vector.broadcast %120 : vector<1x8x1xf32> to vector<1x8x840xf32>
    %122 = arith.mulf %99, %121 : vector<1x8x840xf32>
    %123 = vector.extract_strided_slice %96 {offsets = [0, 4], sizes = [8, 1], strides = [1, 1]} : vector<8x9xf32> to vector<8x1xf32>
    %124 = vector.shape_cast %123 : vector<8x1xf32> to vector<1x8x1xf32>
    %125 = vector.broadcast %124 : vector<1x8x1xf32> to vector<1x8x840xf32>
    %126 = arith.mulf %100, %125 : vector<1x8x840xf32>
    %127 = arith.addf %122, %126 : vector<1x8x840xf32>
    %128 = vector.extract_strided_slice %96 {offsets = [0, 5], sizes = [8, 1], strides = [1, 1]} : vector<8x9xf32> to vector<8x1xf32>
    %129 = vector.shape_cast %128 : vector<8x1xf32> to vector<1x8x1xf32>
    %130 = vector.broadcast %129 : vector<1x8x1xf32> to vector<1x8x840xf32>
    %131 = arith.mulf %103, %130 : vector<1x8x840xf32>
    %132 = arith.addf %127, %131 : vector<1x8x840xf32>
    %133 = vector.extract_strided_slice %132 {offsets = [0, 0, 28], sizes = [1, 8, 784], strides = [1, 1, 1]} : vector<1x8x840xf32> to vector<1x8x784xf32>
    %134 = arith.addf %118, %133 : vector<1x8x784xf32>
    %135 = vector.extract_strided_slice %96 {offsets = [0, 6], sizes = [8, 1], strides = [1, 1]} : vector<8x9xf32> to vector<8x1xf32>
    %136 = vector.shape_cast %135 : vector<8x1xf32> to vector<1x8x1xf32>
    %137 = vector.broadcast %136 : vector<1x8x1xf32> to vector<1x8x840xf32>
    %138 = arith.mulf %99, %137 : vector<1x8x840xf32>
    %139 = vector.extract_strided_slice %96 {offsets = [0, 7], sizes = [8, 1], strides = [1, 1]} : vector<8x9xf32> to vector<8x1xf32>
    %140 = vector.shape_cast %139 : vector<8x1xf32> to vector<1x8x1xf32>
    %141 = vector.broadcast %140 : vector<1x8x1xf32> to vector<1x8x840xf32>
    %142 = arith.mulf %100, %141 : vector<1x8x840xf32>
    %143 = arith.addf %138, %142 : vector<1x8x840xf32>
    %144 = vector.extract_strided_slice %96 {offsets = [0, 8], sizes = [8, 1], strides = [1, 1]} : vector<8x9xf32> to vector<8x1xf32>
    %145 = vector.shape_cast %144 : vector<8x1xf32> to vector<1x8x1xf32>
    %146 = vector.broadcast %145 : vector<1x8x1xf32> to vector<1x8x840xf32>
    %147 = arith.mulf %103, %146 : vector<1x8x840xf32>
    %148 = arith.addf %143, %147 : vector<1x8x840xf32>
    %149 = vector.extract_strided_slice %148 {offsets = [0, 0, 56], sizes = [1, 8, 784], strides = [1, 1, 1]} : vector<1x8x840xf32> to vector<1x8x784xf32>
    %150 = arith.addf %134, %149 : vector<1x8x784xf32>
    %cst_39 = arith.constant dense<0.000000e+00> : vector<8xf32>
    %151 = vector.multi_reduction <add>, %150, %cst_39 [0, 2] : vector<1x8x784xf32> to vector<8xf32>
    %152 = vector.shape_cast %151 : vector<8xf32> to vector<1x8x1xf32>
    %153 = arith.mulf %150, %150 : vector<1x8x784xf32>
    %cst_40 = arith.constant dense<0.000000e+00> : vector<8xf32>
    %154 = vector.multi_reduction <add>, %153, %cst_40 [0, 2] : vector<1x8x784xf32> to vector<8xf32>
    %155 = vector.shape_cast %154 : vector<8xf32> to vector<1x8x1xf32>
    %cst_41 = arith.constant 0.00127551018 : f32
    %156 = vector.broadcast %cst_41 : f32 to vector<1x8x1xf32>
    %157 = arith.mulf %152, %156 : vector<1x8x1xf32>
    %cst_42 = arith.constant 0.00127551018 : f32
    %158 = vector.broadcast %cst_42 : f32 to vector<1x8x1xf32>
    %159 = arith.mulf %155, %158 : vector<1x8x1xf32>
    %160 = arith.mulf %157, %157 : vector<1x8x1xf32>
    %161 = arith.subf %159, %160 : vector<1x8x1xf32>
    %cst_43 = arith.constant 9.99999974E-6 : f32
    %162 = vector.broadcast %cst_43 : f32 to vector<1x8x1xf32>
    %163 = arith.addf %161, %162 : vector<1x8x1xf32>
    %164 = math.rsqrt %163 : vector<1x8x1xf32>
    %c8_44 = arith.constant 8 : index
    %c0_45 = arith.constant 0 : index
    %165 = vector.load %arg2[%c8_44, %c0_45] : memref<24x1xf32, #tpu.memory_space<vmem>>, vector<8x1xf32>
    %166 = vector.shape_cast %165 : vector<8x1xf32> to vector<1x8x1xf32>
    %167 = arith.mulf %166, %164 : vector<1x8x1xf32>
    %c8_46 = arith.constant 8 : index
    %c0_47 = arith.constant 0 : index
    %168 = vector.load %arg3[%c8_46, %c0_47] : memref<24x1xf32, #tpu.memory_space<vmem>>, vector<8x1xf32>
    %169 = arith.mulf %157, %167 : vector<1x8x1xf32>
    %170 = vector.shape_cast %168 : vector<8x1xf32> to vector<1x8x1xf32>
    %171 = arith.subf %170, %169 : vector<1x8x1xf32>
    %172 = vector.broadcast %167 : vector<1x8x1xf32> to vector<1x8x784xf32>
    %173 = arith.mulf %150, %172 : vector<1x8x784xf32>
    %174 = vector.broadcast %171 : vector<1x8x1xf32> to vector<1x8x784xf32>
    %175 = arith.addf %173, %174 : vector<1x8x784xf32>
    %c0_48 = arith.constant 0 : index
    %c8_49 = arith.constant 8 : index
    %c0_50 = arith.constant 0 : index
    %176 = vector.load %arg5[%c0_48, %c8_49, %c0_50] : memref<1x24x784xf32, #tpu.memory_space<vmem>>, vector<1x8x784xf32>
    tpu.vector_store %arg5[%c0_48, %c8_49, %c0_50], %175 {strides = array<i32>} : memref<1x24x784xf32, #tpu.memory_space<vmem>>, vector<1x8x784xf32>,
    %c0_51 = arith.constant 0 : index
    %c16 = arith.constant 16 : index
    %c0_52 = arith.constant 0 : index
    %177 = vector.load %arg0[%c0_51, %c16, %c0_52] : memref<1x24x784xf32, #tpu.memory_space<vmem>>, vector<1x8x784xf32>
    %cst_53 = arith.constant 0.000000e+00 : f32
    %178 = vector.broadcast %cst_53 : f32 to vector<1x8x784xf32>
    %179 = arith.maximumf %177, %178 : vector<1x8x784xf32>
    %c0_54 = arith.constant 0 : index
    %c0_55 = arith.constant 0 : index
    %c128_56 = arith.constant 128 : index
    %180 = vector.load %arg6[%c0_54, %c0_55, %c128_56] : memref<1x8x1024xf32, #tpu.memory_space<vmem>>, vector<1x8x784xf32>
    tpu.vector_store %arg6[%c0_54, %c0_55, %c128_56], %179 {strides = array<i32>} : memref<1x8x1024xf32, #tpu.memory_space<vmem>>, vector<1x8x784xf32>,
    %c0_57 = arith.constant 0 : index
    %c0_58 = arith.constant 0 : index
    %c0_59 = arith.constant 0 : index
    %181 = vector.load %arg6[%c0_57, %c0_58, %c0_59] : memref<1x8x1024xf32, #tpu.memory_space<vmem>>, vector<1x8x1024xf32>
    %c16_60 = arith.constant 16 : index
    %c0_61 = arith.constant 0 : index
    %182 = vector.load %arg1[%c16_60, %c0_61] : memref<24x9xf32, #tpu.memory_space<vmem>>, vector<8x9xf32>
    %183 = vector.extract_strided_slice %181 {offsets = [0, 0, 99], sizes = [1, 8, 840], strides = [1, 1, 1]} : vector<1x8x1024xf32> to vector<1x8x840xf32>
    %184 = vector.broadcast %1 : vector<1x1x840xf32> to vector<1x8x840xf32>
    %185 = arith.mulf %183, %184 : vector<1x8x840xf32>
    %186 = vector.extract_strided_slice %181 {offsets = [0, 0, 100], sizes = [1, 8, 840], strides = [1, 1, 1]} : vector<1x8x1024xf32> to vector<1x8x840xf32>
    %187 = vector.extract_strided_slice %181 {offsets = [0, 0, 101], sizes = [1, 8, 840], strides = [1, 1, 1]} : vector<1x8x1024xf32> to vector<1x8x840xf32>
    %188 = vector.broadcast %2 : vector<1x1x840xf32> to vector<1x8x840xf32>
    %189 = arith.mulf %187, %188 : vector<1x8x840xf32>
    %190 = vector.extract_strided_slice %182 {offsets = [0, 0], sizes = [8, 1], strides = [1, 1]} : vector<8x9xf32> to vector<8x1xf32>
    %191 = vector.shape_cast %190 : vector<8x1xf32> to vector<1x8x1xf32>
    %192 = vector.broadcast %191 : vector<1x8x1xf32> to vector<1x8x840xf32>
    %193 = arith.mulf %185, %192 : vector<1x8x840xf32>
    %194 = vector.extract_strided_slice %182 {offsets = [0, 1], sizes = [8, 1], strides = [1, 1]} : vector<8x9xf32> to vector<8x1xf32>
    %195 = vector.shape_cast %194 : vector<8x1xf32> to vector<1x8x1xf32>
    %196 = vector.broadcast %195 : vector<1x8x1xf32> to vector<1x8x840xf32>
    %197 = arith.mulf %186, %196 : vector<1x8x840xf32>
    %198 = arith.addf %193, %197 : vector<1x8x840xf32>
    %199 = vector.extract_strided_slice %182 {offsets = [0, 2], sizes = [8, 1], strides = [1, 1]} : vector<8x9xf32> to vector<8x1xf32>
    %200 = vector.shape_cast %199 : vector<8x1xf32> to vector<1x8x1xf32>
    %201 = vector.broadcast %200 : vector<1x8x1xf32> to vector<1x8x840xf32>
    %202 = arith.mulf %189, %201 : vector<1x8x840xf32>
    %203 = arith.addf %198, %202 : vector<1x8x840xf32>
    %204 = vector.extract_strided_slice %203 {offsets = [0, 0, 0], sizes = [1, 8, 784], strides = [1, 1, 1]} : vector<1x8x840xf32> to vector<1x8x784xf32>
    %205 = vector.extract_strided_slice %182 {offsets = [0, 3], sizes = [8, 1], strides = [1, 1]} : vector<8x9xf32> to vector<8x1xf32>
    %206 = vector.shape_cast %205 : vector<8x1xf32> to vector<1x8x1xf32>
    %207 = vector.broadcast %206 : vector<1x8x1xf32> to vector<1x8x840xf32>
    %208 = arith.mulf %185, %207 : vector<1x8x840xf32>
    %209 = vector.extract_strided_slice %182 {offsets = [0, 4], sizes = [8, 1], strides = [1, 1]} : vector<8x9xf32> to vector<8x1xf32>
    %210 = vector.shape_cast %209 : vector<8x1xf32> to vector<1x8x1xf32>
    %211 = vector.broadcast %210 : vector<1x8x1xf32> to vector<1x8x840xf32>
    %212 = arith.mulf %186, %211 : vector<1x8x840xf32>
    %213 = arith.addf %208, %212 : vector<1x8x840xf32>
    %214 = vector.extract_strided_slice %182 {offsets = [0, 5], sizes = [8, 1], strides = [1, 1]} : vector<8x9xf32> to vector<8x1xf32>
    %215 = vector.shape_cast %214 : vector<8x1xf32> to vector<1x8x1xf32>
    %216 = vector.broadcast %215 : vector<1x8x1xf32> to vector<1x8x840xf32>
    %217 = arith.mulf %189, %216 : vector<1x8x840xf32>
    %218 = arith.addf %213, %217 : vector<1x8x840xf32>
    %219 = vector.extract_strided_slice %218 {offsets = [0, 0, 28], sizes = [1, 8, 784], strides = [1, 1, 1]} : vector<1x8x840xf32> to vector<1x8x784xf32>
    %220 = arith.addf %204, %219 : vector<1x8x784xf32>
    %221 = vector.extract_strided_slice %182 {offsets = [0, 6], sizes = [8, 1], strides = [1, 1]} : vector<8x9xf32> to vector<8x1xf32>
    %222 = vector.shape_cast %221 : vector<8x1xf32> to vector<1x8x1xf32>
    %223 = vector.broadcast %222 : vector<1x8x1xf32> to vector<1x8x840xf32>
    %224 = arith.mulf %185, %223 : vector<1x8x840xf32>
    %225 = vector.extract_strided_slice %182 {offsets = [0, 7], sizes = [8, 1], strides = [1, 1]} : vector<8x9xf32> to vector<8x1xf32>
    %226 = vector.shape_cast %225 : vector<8x1xf32> to vector<1x8x1xf32>
    %227 = vector.broadcast %226 : vector<1x8x1xf32> to vector<1x8x840xf32>
    %228 = arith.mulf %186, %227 : vector<1x8x840xf32>
    %229 = arith.addf %224, %228 : vector<1x8x840xf32>
    %230 = vector.extract_strided_slice %182 {offsets = [0, 8], sizes = [8, 1], strides = [1, 1]} : vector<8x9xf32> to vector<8x1xf32>
    %231 = vector.shape_cast %230 : vector<8x1xf32> to vector<1x8x1xf32>
    %232 = vector.broadcast %231 : vector<1x8x1xf32> to vector<1x8x840xf32>
    %233 = arith.mulf %189, %232 : vector<1x8x840xf32>
    %234 = arith.addf %229, %233 : vector<1x8x840xf32>
    %235 = vector.extract_strided_slice %234 {offsets = [0, 0, 56], sizes = [1, 8, 784], strides = [1, 1, 1]} : vector<1x8x840xf32> to vector<1x8x784xf32>
    %236 = arith.addf %220, %235 : vector<1x8x784xf32>
    %cst_62 = arith.constant dense<0.000000e+00> : vector<8xf32>
    %237 = vector.multi_reduction <add>, %236, %cst_62 [0, 2] : vector<1x8x784xf32> to vector<8xf32>
    %238 = vector.shape_cast %237 : vector<8xf32> to vector<1x8x1xf32>
    %239 = arith.mulf %236, %236 : vector<1x8x784xf32>
    %cst_63 = arith.constant dense<0.000000e+00> : vector<8xf32>
    %240 = vector.multi_reduction <add>, %239, %cst_63 [0, 2] : vector<1x8x784xf32> to vector<8xf32>
    %241 = vector.shape_cast %240 : vector<8xf32> to vector<1x8x1xf32>
    %cst_64 = arith.constant 0.00127551018 : f32
    %242 = vector.broadcast %cst_64 : f32 to vector<1x8x1xf32>
    %243 = arith.mulf %238, %242 : vector<1x8x1xf32>
    %cst_65 = arith.constant 0.00127551018 : f32
    %244 = vector.broadcast %cst_65 : f32 to vector<1x8x1xf32>
    %245 = arith.mulf %241, %244 : vector<1x8x1xf32>
    %246 = arith.mulf %243, %243 : vector<1x8x1xf32>
    %247 = arith.subf %245, %246 : vector<1x8x1xf32>
    %cst_66 = arith.constant 9.99999974E-6 : f32
    %248 = vector.broadcast %cst_66 : f32 to vector<1x8x1xf32>
    %249 = arith.addf %247, %248 : vector<1x8x1xf32>
    %250 = math.rsqrt %249 : vector<1x8x1xf32>
    %c16_67 = arith.constant 16 : index
    %c0_68 = arith.constant 0 : index
    %251 = vector.load %arg2[%c16_67, %c0_68] : memref<24x1xf32, #tpu.memory_space<vmem>>, vector<8x1xf32>
    %252 = vector.shape_cast %251 : vector<8x1xf32> to vector<1x8x1xf32>
    %253 = arith.mulf %252, %250 : vector<1x8x1xf32>
    %c16_69 = arith.constant 16 : index
    %c0_70 = arith.constant 0 : index
    %254 = vector.load %arg3[%c16_69, %c0_70] : memref<24x1xf32, #tpu.memory_space<vmem>>, vector<8x1xf32>
    %255 = arith.mulf %243, %253 : vector<1x8x1xf32>
    %256 = vector.shape_cast %254 : vector<8x1xf32> to vector<1x8x1xf32>
    %257 = arith.subf %256, %255 : vector<1x8x1xf32>
    %258 = vector.broadcast %253 : vector<1x8x1xf32> to vector<1x8x784xf32>
    %259 = arith.mulf %236, %258 : vector<1x8x784xf32>
    %260 = vector.broadcast %257 : vector<1x8x1xf32> to vector<1x8x784xf32>
    %261 = arith.addf %259, %260 : vector<1x8x784xf32>
    %c0_71 = arith.constant 0 : index
    %c16_72 = arith.constant 16 : index
    %c0_73 = arith.constant 0 : index
    %262 = vector.load %arg5[%c0_71, %c16_72, %c0_73] : memref<1x24x784xf32, #tpu.memory_space<vmem>>, vector<1x8x784xf32>
    tpu.vector_store %arg5[%c0_71, %c16_72, %c0_73], %261 {strides = array<i32>} : memref<1x24x784xf32, #tpu.memory_space<vmem>>, vector<1x8x784xf32>,
    return
  }
}

</mosaic_0001>

<llo_original>
// kernel: relu_dwconv_bn.1
$region0: #{relu_dwconv_bn.1}
  #allocation0 [shape = 'u32[]', space=smem, size = 0x4, offset = 0x4, fixed_abs, tag = 'smem constant byte address 0x4 - core index']
  #allocation1 [shape = 'u32[144,128]{1,0:T(1,128)}', space=vmem, size = 0x12000, scoped, tag = 'internal scratch']
  #allocation2 [shape = 'f32[1,8,1024]{2,1,0:T(8,128)}', space=vmem, size = 0x8000, scoped, tag = 'scratch operand']
  %s0 = inlined_call_operand.vmem [shape: f32[1,24,784], index: 0, kind: input, shape index: {}]
  %s1 = inlined_call_operand.vmem [shape: f32[24,9], index: 1, kind: input, shape index: {}]
  %s2 = inlined_call_operand.vmem [shape: f32[24,1], index: 2, kind: input, shape index: {}]
  %s3 = inlined_call_operand.vmem [shape: f32[24,1], index: 3, kind: input, shape index: {}]
  %s4 = inlined_call_operand.vmem [shape: f32[1,1,896], index: 4, kind: input, shape index: {}]
  %s5 = inlined_call_operand.vmem [shape: f32[1,24,784], index: 5, kind: output, shape index: {}]
  %s6 = sld [smem:[#allocation0]]
  $region30: #{relu_dwconv_bn.1} parent=0
    _
  %s8 = ssub.s32 1, %s6
  %s9 = scalar_select 0, %s8, %s6
  // Predicated region
  $region2: #{relu_dwconv_bn.1} parent=0 // pred_check
    _
  $region3: #{relu_dwconv_bn.1} parent=0 // pred_check_branch
    %11 = sbr.rel (0) target = $region5
  $region4: #{relu_dwconv_bn.1} parent=0 // pred_region
    _
  $region5: #{relu_dwconv_bn.1} parent=0 // pred_fallthru
    _
  // Predicated region
  $region6: #{relu_dwconv_bn.1} parent=0 // pred_check
    _
  $region7: #{relu_dwconv_bn.1} parent=0 // pred_check_branch
    %13 = sbr.rel (0) target = $region9
  $region8: #{relu_dwconv_bn.1} parent=0 // pred_region
    _
  $region9: #{relu_dwconv_bn.1} parent=0 // pred_fallthru
    _
  // Predicated region
  $region10: #{relu_dwconv_bn.1} parent=0 // pred_check
    _
  $region11: #{relu_dwconv_bn.1} parent=0 // pred_check_branch
    %15 = sbr.rel (0) target = $region13
  $region12: #{relu_dwconv_bn.1} parent=0 // pred_region
    _
  $region13: #{relu_dwconv_bn.1} parent=0 // pred_fallthru
    _
  // Predicated region
  $region14: #{relu_dwconv_bn.1} parent=0 // pred_check
    _
  $region15: #{relu_dwconv_bn.1} parent=0 // pred_check_branch
    %17 = sbr.rel (0) target = $region17
  $region16: #{relu_dwconv_bn.1} parent=0 // pred_region
    _
  $region17: #{relu_dwconv_bn.1} parent=0 // pred_fallthru
    _
  // Predicated region
  $region18: #{relu_dwconv_bn.1} parent=0 // pred_check
    _
  $region19: #{relu_dwconv_bn.1} parent=0 // pred_check_branch
    %19 = sbr.rel (0) target = $region21
  $region20: #{relu_dwconv_bn.1} parent=0 // pred_region
    _
  $region21: #{relu_dwconv_bn.1} parent=0 // pred_fallthru
    _
  %v20 = vld [vmem:[%s4] sm:$0xff]
  %21 = vst [vmem:[#allocation2] sm:$0xff] 0.0
  %22 = vst [vmem:[#allocation2 + $0x8] sm:$0xff] 0.0
  %23 = vst [vmem:[#allocation2 + $0x10] sm:$0xff] 0.0
  %24 = vst [vmem:[#allocation2 + $0x18] sm:$0xff] 0.0
  %25 = vst [vmem:[#allocation2 + $0x20] sm:$0xff] 0.0
  %26 = vst [vmem:[#allocation2 + $0x28] sm:$0xff] 0.0
  %27 = vst [vmem:[#allocation2 + $0x30] sm:$0xff] 0.0
  %28 = vst [vmem:[#allocation2 + $0x38] sm:$0xff] 0.0
  %v29 = vld [vmem:[%s0] sm:$0xff]
  %v30 = vld [vmem:[%s0 + $0x8] sm:$0xff]
  %v31 = vld [vmem:[%s0 + $0x10] sm:$0xff]
  %v32 = vld [vmem:[%s0 + $0x18] sm:$0xff]
  %v33 = vld [vmem:[%s0 + $0x20] sm:$0xff]
  %v34 = vld [vmem:[%s0 + $0x28] sm:$0xff]
  %v35 = vld [vmem:[%s0 + $0x30] sm:$0xff]
  %v36 = vmax.f32 %v29, 0.0
  %v37 = vmax.f32 %v30, 0.0
  %v38 = vmax.f32 %v31, 0.0
  %v39 = vmax.f32 %v32, 0.0
  %v40 = vmax.f32 %v33, 0.0
  %v41 = vmax.f32 %v34, 0.0
  %v42 = vmax.f32 %v35, 0.0
  %43 = vst [vmem:[#allocation2 + $0x8] sm:$0xff] %v36
  %44 = vst [vmem:[#allocation2 + $0x10] sm:$0xff] %v37
  %45 = vst [vmem:[#allocation2 + $0x18] sm:$0xff] %v38
  %46 = vst [vmem:[#allocation2 + $0x20] sm:$0xff] %v39
  %47 = vst [vmem:[#allocation2 + $0x28] sm:$0xff] %v40
  %48 = vst [vmem:[#allocation2 + $0x30] sm:$0xff] %v41
  %vm49 = vcmask 130048
  %50 = vst.msk [vmem:[#allocation2 + $0x38] sm:$0xff] %vm49, %v42
  %v51 = vld [vmem:[#allocation2] sm:$0xff]
  %v52 = vld [vmem:[#allocation2 + $0x8] sm:$0xff]
  %v53 = vld [vmem:[#allocation2 + $0x10] sm:$0xff]
  %v54 = vld [vmem:[#allocation2 + $0x18] sm:$0xff]
  %v55 = vld [vmem:[#allocation2 + $0x20] sm:$0xff]
  %v56 = vld [vmem:[#allocation2 + $0x28] sm:$0xff]
  %v57 = vld [vmem:[#allocation2 + $0x30] sm:$0xff]
  %v58 = vld [vmem:[#allocation2 + $0x38] sm:$0xff]
  %v59 = vld [vmem:[%s1] sm:$0xff]
  %v61 = vlaneseq
  %v62 = vshrl.u32 %v61, 7
  %v63 = vsub.s32 0, %v62
  %v64 = vrot.slane %v20, %v63
  %v65 = vlaneseq
  %v66 = vshrl.u32 %v65, 7
  %v67 = vsub.s32 1, %v66
  %v68 = vrot.slane %v20, %v67
  %v69 = vlaneseq
  %v70 = vshrl.u32 %v69, 7
  %v71 = vsub.s32 2, %v70
  %v72 = vrot.slane %v20, %v71
  %v73 = vlaneseq
  %v74 = vshrl.u32 %v73, 7
  %v75 = vsub.s32 3, %v74
  %v76 = vrot.slane %v20, %v75
  %v77 = vlaneseq
  %v78 = vshrl.u32 %v77, 7
  %v79 = vsub.s32 4, %v78
  %v80 = vrot.slane %v20, %v79
  %v81 = vlaneseq
  %v82 = vshrl.u32 %v81, 7
  %v83 = vsub.s32 5, %v82
  %v84 = vrot.slane %v20, %v83
  %v85 = vlaneseq
  %v86 = vshrl.u32 %v85, 7
  %v87 = vsub.s32 6, %v86
  %v88 = vrot.slane %v20, %v87
  %89 = vrot.lane.b32.xlu0 %v64, 99
  %v90 = vpop.permute.xlu0 %89
  %91 = vrot.lane.b32.xlu0 %v68, 99
  %v92 = vpop.permute.xlu0 %91
  %93 = vrot.lane.b32.xlu0 %v72, 99
  %v94 = vpop.permute.xlu0 %93
  %95 = vrot.lane.b32.xlu0 %v76, 99
  %v96 = vpop.permute.xlu0 %95
  %97 = vrot.lane.b32.xlu0 %v80, 99
  %v98 = vpop.permute.xlu0 %97
  %99 = vrot.lane.b32.xlu0 %v84, 99
  %v100 = vpop.permute.xlu0 %99
  %101 = vrot.lane.b32.xlu0 %v88, 99
  %v102 = vpop.permute.xlu0 %101
  %vm103 = vcmask 809984
  %v104 = vsel %vm103, %v90, %v92
  %v105 = vsel %vm103, %v92, %v94
  %v106 = vsel %vm103, %v94, %v96
  %v107 = vsel %vm103, %v96, %v98
  %v108 = vsel %vm103, %v98, %v100
  %v109 = vsel %vm103, %v100, %v102
  %v118 = vmul.f32 %v51, %v90
  %v119 = vmul.f32 %v52, %v104
  %v120 = vmul.f32 %v53, %v105
  %v121 = vmul.f32 %v54, %v106
  %v122 = vmul.f32 %v55, %v107
  %v123 = vmul.f32 %v56, %v108
  %v124 = vmul.f32 %v57, %v109
  %v125 = vmul.f32 %v58, %v102
  %126 = vrot.lane.b32.xlu0 %v64, 100
  %v127 = vpop.permute.xlu0 %126
  %128 = vrot.lane.b32.xlu0 %v68, 100
  %v129 = vpop.permute.xlu0 %128
  %130 = vrot.lane.b32.xlu0 %v72, 100
  %v131 = vpop.permute.xlu0 %130
  %132 = vrot.lane.b32.xlu0 %v76, 100
  %v133 = vpop.permute.xlu0 %132
  %134 = vrot.lane.b32.xlu0 %v80, 100
  %v135 = vpop.permute.xlu0 %134
  %136 = vrot.lane.b32.xlu0 %v84, 100
  %v137 = vpop.permute.xlu0 %136
  %138 = vrot.lane.b32.xlu0 %v88, 100
  %v139 = vpop.permute.xlu0 %138
  %vm140 = vcmask 818176
  %v141 = vsel %vm140, %v127, %v129
  %v142 = vsel %vm140, %v129, %v131
  %v143 = vsel %vm140, %v131, %v133
  %v144 = vsel %vm140, %v133, %v135
  %v145 = vsel %vm140, %v135, %v137
  %v146 = vsel %vm140, %v137, %v139
  %v155 = vmul.f32 %v51, %v127
  %v156 = vmul.f32 %v52, %v141
  %v157 = vmul.f32 %v53, %v142
  %v158 = vmul.f32 %v54, %v143
  %v159 = vmul.f32 %v55, %v144
  %v160 = vmul.f32 %v56, %v145
  %v161 = vmul.f32 %v57, %v146
  %v162 = vmul.f32 %v58, %v139
  %164 = vset.pattern.permute.xlu0 0
  %165 = vperm.xlu0 %164, %v59
  %v166 = vpop.permute.xlu0 %165
  %v168 = vmul.f32 %v118, %v166
  %v169 = vmul.f32 %v119, %v166
  %v170 = vmul.f32 %v120, %v166
  %v171 = vmul.f32 %v121, %v166
  %v172 = vmul.f32 %v122, %v166
  %v173 = vmul.f32 %v123, %v166
  %v174 = vmul.f32 %v124, %v166
  %175 = vset.pattern.permute.xlu0 1
  %176 = vperm.xlu0 %175, %v59
  %v177 = vpop.permute.xlu0 %176
  %v179 = vmul.f32 %v51, %v177
  %v180 = vmul.f32 %v52, %v177
  %v181 = vmul.f32 %v53, %v177
  %v182 = vmul.f32 %v54, %v177
  %v183 = vmul.f32 %v55, %v177
  %v184 = vmul.f32 %v56, %v177
  %v185 = vmul.f32 %v57, %v177
  %v186 = vmul.f32 %v58, %v177
  %195 = vrot.lane.b32.xlu0 %v179, 127
  %v196 = vpop.permute.xlu0 %195
  %197 = vrot.lane.b32.xlu0 %v180, 127
  %v198 = vpop.permute.xlu0 %197
  %199 = vrot.lane.b32.xlu0 %v181, 127
  %v200 = vpop.permute.xlu0 %199
  %201 = vrot.lane.b32.xlu0 %v182, 127
  %v202 = vpop.permute.xlu0 %201
  %203 = vrot.lane.b32.xlu0 %v183, 127
  %v204 = vpop.permute.xlu0 %203
  %205 = vrot.lane.b32.xlu0 %v184, 127
  %v206 = vpop.permute.xlu0 %205
  %207 = vrot.lane.b32.xlu0 %v185, 127
  %v208 = vpop.permute.xlu0 %207
  %209 = vrot.lane.b32.xlu0 %v186, 127
  %v210 = vpop.permute.xlu0 %209
  %vm211 = vcmask 1039360
  %v212 = vsel %vm211, %v196, %v198
  %v213 = vsel %vm211, %v198, %v200
  %v214 = vsel %vm211, %v200, %v202
  %v215 = vsel %vm211, %v202, %v204
  %v216 = vsel %vm211, %v204, %v206
  %v217 = vsel %vm211, %v206, %v208
  %v218 = vsel %vm211, %v208, %v210
  %v226 = vadd.f32 %v168, %v212
  %v227 = vadd.f32 %v169, %v213
  %v228 = vadd.f32 %v170, %v214
  %v229 = vadd.f32 %v171, %v215
  %v230 = vadd.f32 %v172, %v216
  %v231 = vadd.f32 %v173, %v217
  %v232 = vadd.f32 %v174, %v218
  %233 = vset.pattern.permute.xlu0 2
  %234 = vperm.xlu0 %233, %v59
  %v235 = vpop.permute.xlu0 %234
  %v237 = vmul.f32 %v155, %v235
  %v238 = vmul.f32 %v156, %v235
  %v239 = vmul.f32 %v157, %v235
  %v240 = vmul.f32 %v158, %v235
  %v241 = vmul.f32 %v159, %v235
  %v242 = vmul.f32 %v160, %v235
  %v243 = vmul.f32 %v161, %v235
  %v244 = vmul.f32 %v162, %v235
  %253 = vrot.lane.b32.xlu0 %v237, 126
  %v254 = vpop.permute.xlu0 %253
  %255 = vrot.lane.b32.xlu0 %v238, 126
  %v256 = vpop.permute.xlu0 %255
  %257 = vrot.lane.b32.xlu0 %v239, 126
  %v258 = vpop.permute.xlu0 %257
  %259 = vrot.lane.b32.xlu0 %v240, 126
  %v260 = vpop.permute.xlu0 %259
  %261 = vrot.lane.b32.xlu0 %v241, 126
  %v262 = vpop.permute.xlu0 %261
  %263 = vrot.lane.b32.xlu0 %v242, 126
  %v264 = vpop.permute.xlu0 %263
  %265 = vrot.lane.b32.xlu0 %v243, 126
  %v266 = vpop.permute.xlu0 %265
  %267 = vrot.lane.b32.xlu0 %v244, 126
  %v268 = vpop.permute.xlu0 %267
  %vm269 = vcmask 1031168
  %v270 = vsel %vm269, %v254, %v256
  %v271 = vsel %vm269, %v256, %v258
  %v272 = vsel %vm269, %v258, %v260
  %v273 = vsel %vm269, %v260, %v262
  %v274 = vsel %vm269, %v262, %v264
  %v275 = vsel %vm269, %v264, %v266
  %v276 = vsel %vm269, %v266, %v268
  %v284 = vadd.f32 %v226, %v270
  %v285 = vadd.f32 %v227, %v271
  %v286 = vadd.f32 %v228, %v272
  %v287 = vadd.f32 %v229, %v273
  %v288 = vadd.f32 %v230, %v274
  %v289 = vadd.f32 %v231, %v275
  %v290 = vadd.f32 %v232, %v276
  %291 = vset.pattern.permute.xlu0 3
  %292 = vperm.xlu0 %291, %v59
  %v293 = vpop.permute.xlu0 %292
  %v295 = vmul.f32 %v118, %v293
  %v296 = vmul.f32 %v119, %v293
  %v297 = vmul.f32 %v120, %v293
  %v298 = vmul.f32 %v121, %v293
  %v299 = vmul.f32 %v122, %v293
  %v300 = vmul.f32 %v123, %v293
  %v301 = vmul.f32 %v124, %v293
  %v302 = vmul.f32 %v125, %v293
  %303 = vset.pattern.permute.xlu0 4
  %304 = vperm.xlu0 %303, %v59
  %v305 = vpop.permute.xlu0 %304
  %v307 = vmul.f32 %v51, %v305
  %v308 = vmul.f32 %v52, %v305
  %v309 = vmul.f32 %v53, %v305
  %v310 = vmul.f32 %v54, %v305
  %v311 = vmul.f32 %v55, %v305
  %v312 = vmul.f32 %v56, %v305
  %v313 = vmul.f32 %v57, %v305
  %v314 = vmul.f32 %v58, %v305
  %323 = vrot.lane.b32.xlu0 %v307, 127
  %v324 = vpop.permute.xlu0 %323
  %325 = vrot.lane.b32.xlu0 %v308, 127
  %v326 = vpop.permute.xlu0 %325
  %327 = vrot.lane.b32.xlu0 %v309, 127
  %v328 = vpop.permute.xlu0 %327
  %329 = vrot.lane.b32.xlu0 %v310, 127
  %v330 = vpop.permute.xlu0 %329
  %331 = vrot.lane.b32.xlu0 %v311, 127
  %v332 = vpop.permute.xlu0 %331
  %333 = vrot.lane.b32.xlu0 %v312, 127
  %v334 = vpop.permute.xlu0 %333
  %335 = vrot.lane.b32.xlu0 %v313, 127
  %v336 = vpop.permute.xlu0 %335
  %337 = vrot.lane.b32.xlu0 %v314, 127
  %v338 = vpop.permute.xlu0 %337
  %v339 = vsel %vm211, %v324, %v326
  %v340 = vsel %vm211, %v326, %v328
  %v341 = vsel %vm211, %v328, %v330
  %v342 = vsel %vm211, %v330, %v332
  %v343 = vsel %vm211, %v332, %v334
  %v344 = vsel %vm211, %v334, %v336
  %v345 = vsel %vm211, %v336, %v338
  %v354 = vadd.f32 %v295, %v339
  %v355 = vadd.f32 %v296, %v340
  %v356 = vadd.f32 %v297, %v341
  %v357 = vadd.f32 %v298, %v342
  %v358 = vadd.f32 %v299, %v343
  %v359 = vadd.f32 %v300, %v344
  %v360 = vadd.f32 %v301, %v345
  %v361 = vadd.f32 %v302, %v338
  %362 = vset.pattern.permute.xlu0 5
  %363 = vperm.xlu0 %362, %v59
  %v364 = vpop.permute.xlu0 %363
  %v366 = vmul.f32 %v155, %v364
  %v367 = vmul.f32 %v156, %v364
  %v368 = vmul.f32 %v157, %v364
  %v369 = vmul.f32 %v158, %v364
  %v370 = vmul.f32 %v159, %v364
  %v371 = vmul.f32 %v160, %v364
  %v372 = vmul.f32 %v161, %v364
  %v373 = vmul.f32 %v162, %v364
  %382 = vrot.lane.b32.xlu0 %v366, 126
  %v383 = vpop.permute.xlu0 %382
  %384 = vrot.lane.b32.xlu0 %v367, 126
  %v385 = vpop.permute.xlu0 %384
  %386 = vrot.lane.b32.xlu0 %v368, 126
  %v387 = vpop.permute.xlu0 %386
  %388 = vrot.lane.b32.xlu0 %v369, 126
  %v389 = vpop.permute.xlu0 %388
  %390 = vrot.lane.b32.xlu0 %v370, 126
  %v391 = vpop.permute.xlu0 %390
  %392 = vrot.lane.b32.xlu0 %v371, 126
  %v393 = vpop.permute.xlu0 %392
  %394 = vrot.lane.b32.xlu0 %v372, 126
  %v395 = vpop.permute.xlu0 %394
  %396 = vrot.lane.b32.xlu0 %v373, 126
  %v397 = vpop.permute.xlu0 %396
  %v398 = vsel %vm269, %v383, %v385
  %v399 = vsel %vm269, %v385, %v387
  %v400 = vsel %vm269, %v387, %v389
  %v401 = vsel %vm269, %v389, %v391
  %v402 = vsel %vm269, %v391, %v393
  %v403 = vsel %vm269, %v393, %v395
  %v404 = vsel %vm269, %v395, %v397
  %v413 = vadd.f32 %v354, %v398
  %v414 = vadd.f32 %v355, %v399
  %v415 = vadd.f32 %v356, %v400
  %v416 = vadd.f32 %v357, %v401
  %v417 = vadd.f32 %v358, %v402
  %v418 = vadd.f32 %v359, %v403
  %v419 = vadd.f32 %v360, %v404
  %v420 = vadd.f32 %v361, %v397
  %429 = vrot.lane.b32.xlu0 %v413, 100
  %v430 = vpop.permute.xlu0 %429
  %431 = vrot.lane.b32.xlu0 %v414, 100
  %v432 = vpop.permute.xlu0 %431
  %433 = vrot.lane.b32.xlu0 %v415, 100
  %v434 = vpop.permute.xlu0 %433
  %435 = vrot.lane.b32.xlu0 %v416, 100
  %v436 = vpop.permute.xlu0 %435
  %437 = vrot.lane.b32.xlu0 %v417, 100
  %v438 = vpop.permute.xlu0 %437
  %439 = vrot.lane.b32.xlu0 %v418, 100
  %v440 = vpop.permute.xlu0 %439
  %441 = vrot.lane.b32.xlu0 %v419, 100
  %v442 = vpop.permute.xlu0 %441
  %443 = vrot.lane.b32.xlu0 %v420, 100
  %v444 = vpop.permute.xlu0 %443
  %v445 = vsel %vm140, %v430, %v432
  %v446 = vsel %vm140, %v432, %v434
  %v447 = vsel %vm140, %v434, %v436
  %v448 = vsel %vm140, %v436, %v438
  %v449 = vsel %vm140, %v438, %v440
  %v450 = vsel %vm140, %v440, %v442
  %v451 = vsel %vm140, %v442, %v444
  %v459 = vadd.f32 %v284, %v445
  %v460 = vadd.f32 %v285, %v446
  %v461 = vadd.f32 %v286, %v447
  %v462 = vadd.f32 %v287, %v448
  %v463 = vadd.f32 %v288, %v449
  %v464 = vadd.f32 %v289, %v450
  %v465 = vadd.f32 %v290, %v451
  %466 = vset.pattern.permute.xlu0 6
  %467 = vperm.xlu0 %466, %v59
  %v468 = vpop.permute.xlu0 %467
  %v470 = vmul.f32 %v119, %v468
  %v471 = vmul.f32 %v120, %v468
  %v472 = vmul.f32 %v121, %v468
  %v473 = vmul.f32 %v122, %v468
  %v474 = vmul.f32 %v123, %v468
  %v475 = vmul.f32 %v124, %v468
  %v476 = vmul.f32 %v125, %v468
  %477 = vset.pattern.permute.xlu0 7
  %478 = vperm.xlu0 %477, %v59
  %v479 = vpop.permute.xlu0 %478
  %v481 = vmul.f32 %v52, %v479
  %v482 = vmul.f32 %v53, %v479
  %v483 = vmul.f32 %v54, %v479
  %v484 = vmul.f32 %v55, %v479
  %v485 = vmul.f32 %v56, %v479
  %v486 = vmul.f32 %v57, %v479
  %v487 = vmul.f32 %v58, %v479
  %495 = vrot.lane.b32.xlu0 %v481, 127
  %v496 = vpop.permute.xlu0 %495
  %497 = vrot.lane.b32.xlu0 %v482, 127
  %v498 = vpop.permute.xlu0 %497
  %499 = vrot.lane.b32.xlu0 %v483, 127
  %v500 = vpop.permute.xlu0 %499
  %501 = vrot.lane.b32.xlu0 %v484, 127
  %v502 = vpop.permute.xlu0 %501
  %503 = vrot.lane.b32.xlu0 %v485, 127
  %v504 = vpop.permute.xlu0 %503
  %505 = vrot.lane.b32.xlu0 %v486, 127
  %v506 = vpop.permute.xlu0 %505
  %507 = vrot.lane.b32.xlu0 %v487, 127
  %v508 = vpop.permute.xlu0 %507
  %v509 = vsel %vm211, %v496, %v498
  %v510 = vsel %vm211, %v498, %v500
  %v511 = vsel %vm211, %v500, %v502
  %v512 = vsel %vm211, %v502, %v504
  %v513 = vsel %vm211, %v504, %v506
  %v514 = vsel %vm211, %v506, %v508
  %v522 = vadd.f32 %v470, %v509
  %v523 = vadd.f32 %v471, %v510
  %v524 = vadd.f32 %v472, %v511
  %v525 = vadd.f32 %v473, %v512
  %v526 = vadd.f32 %v474, %v513
  %v527 = vadd.f32 %v475, %v514
  %v528 = vadd.f32 %v476, %v508
  %529 = vset.pattern.permute.xlu0 8
  %530 = vperm.xlu0 %529, %v59
  %v531 = vpop.permute.xlu0 %530
  %v533 = vmul.f32 %v156, %v531
  %v534 = vmul.f32 %v157, %v531
  %v535 = vmul.f32 %v158, %v531
  %v536 = vmul.f32 %v159, %v531
  %v537 = vmul.f32 %v160, %v531
  %v538 = vmul.f32 %v161, %v531
  %v539 = vmul.f32 %v162, %v531
  %547 = vrot.lane.b32.xlu0 %v533, 126
  %v548 = vpop.permute.xlu0 %547
  %549 = vrot.lane.b32.xlu0 %v534, 126
  %v550 = vpop.permute.xlu0 %549
  %551 = vrot.lane.b32.xlu0 %v535, 126
  %v552 = vpop.permute.xlu0 %551
  %553 = vrot.lane.b32.xlu0 %v536, 126
  %v554 = vpop.permute.xlu0 %553
  %555 = vrot.lane.b32.xlu0 %v537, 126
  %v556 = vpop.permute.xlu0 %555
  %557 = vrot.lane.b32.xlu0 %v538, 126
  %v558 = vpop.permute.xlu0 %557
  %559 = vrot.lane.b32.xlu0 %v539, 126
  %v560 = vpop.permute.xlu0 %559
  %v561 = vsel %vm269, %v548, %v550
  %v562 = vsel %vm269, %v550, %v552
  %v563 = vsel %vm269, %v552, %v554
  %v564 = vsel %vm269, %v554, %v556
  %v565 = vsel %vm269, %v556, %v558
  %v566 = vsel %vm269, %v558, %v560
  %v574 = vadd.f32 %v522, %v561
  %v575 = vadd.f32 %v523, %v562
  %v576 = vadd.f32 %v524, %v563
  %v577 = vadd.f32 %v525, %v564
  %v578 = vadd.f32 %v526, %v565
  %v579 = vadd.f32 %v527, %v566
  %v580 = vadd.f32 %v528, %v560
  %588 = vrot.lane.b32.xlu0 %v574, 72
  %v589 = vpop.permute.xlu0 %588
  %590 = vrot.lane.b32.xlu0 %v575, 72
  %v591 = vpop.permute.xlu0 %590
  %592 = vrot.lane.b32.xlu0 %v576, 72
  %v593 = vpop.permute.xlu0 %592
  %594 = vrot.lane.b32.xlu0 %v577, 72
  %v595 = vpop.permute.xlu0 %594
  %596 = vrot.lane.b32.xlu0 %v578, 72
  %v597 = vpop.permute.xlu0 %596
  %598 = vrot.lane.b32.xlu0 %v579, 72
  %v599 = vpop.permute.xlu0 %598
  %600 = vrot.lane.b32.xlu0 %v580, 72
  %v601 = vpop.permute.xlu0 %600
  %vm602 = vcmask 588800
  %v603 = vsel %vm602, %v589, %v591
  %v604 = vsel %vm602, %v591, %v593
  %v605 = vsel %vm602, %v593, %v595
  %v606 = vsel %vm602, %v595, %v597
  %v607 = vsel %vm602, %v597, %v599
  %v608 = vsel %vm602, %v599, %v601
  %v616 = vadd.f32 %v459, %v589
  %v617 = vadd.f32 %v460, %v603
  %v618 = vadd.f32 %v461, %v604
  %v619 = vadd.f32 %v462, %v605
  %v620 = vadd.f32 %v463, %v606
  %v621 = vadd.f32 %v464, %v607
  %v622 = vadd.f32 %v465, %v608
  %630 = vrot.lane.b32.xlu0 %v616, 29
  %v631 = vpop.permute.xlu0 %630
  %632 = vrot.lane.b32.xlu0 %v617, 29
  %v633 = vpop.permute.xlu0 %632
  %634 = vrot.lane.b32.xlu0 %v618, 29
  %v635 = vpop.permute.xlu0 %634
  %636 = vrot.lane.b32.xlu0 %v619, 29
  %v637 = vpop.permute.xlu0 %636
  %638 = vrot.lane.b32.xlu0 %v620, 29
  %v639 = vpop.permute.xlu0 %638
  %640 = vrot.lane.b32.xlu0 %v621, 29
  %v641 = vpop.permute.xlu0 %640
  %642 = vrot.lane.b32.xlu0 %v622, 29
  %v643 = vpop.permute.xlu0 %642
  %vm644 = vcmask 236544
  %v645 = vsel %vm644, %v631, %v633
  %v646 = vsel %vm644, %v633, %v635
  %v647 = vsel %vm644, %v635, %v637
  %v648 = vsel %vm644, %v637, %v639
  %v649 = vsel %vm644, %v639, %v641
  %v650 = vsel %vm644, %v641, %v643
  %v658 = vadd.f32 %v645, %v646
  %v659 = vadd.f32 %v658, %v647
  %v660 = vadd.f32 %v659, %v648
  %v661 = vadd.f32 %v660, %v649
  %v662 = vadd.f32 %v661, %v650
  %v663 = vsel %vm49, %v643, 0.0
  %v664 = vadd.f32 %v662, %v663
  %665 = vadd.xlane.f32.xlu0 %v664
  %v666 = vpop.xlane.xlu0 %665
  %v667 = vmul.f32 %v616, %v616
  %v668 = vmul.f32 %v617, %v617
  %v669 = vmul.f32 %v618, %v618
  %v670 = vmul.f32 %v619, %v619
  %v671 = vmul.f32 %v620, %v620
  %v672 = vmul.f32 %v621, %v621
  %v673 = vmul.f32 %v622, %v622
  %681 = vrot.lane.b32.xlu0 %v667, 29
  %v682 = vpop.permute.xlu0 %681
  %683 = vrot.lane.b32.xlu0 %v668, 29
  %v684 = vpop.permute.xlu0 %683
  %685 = vrot.lane.b32.xlu0 %v669, 29
  %v686 = vpop.permute.xlu0 %685
  %687 = vrot.lane.b32.xlu0 %v670, 29
  %v688 = vpop.permute.xlu0 %687
  %689 = vrot.lane.b32.xlu0 %v671, 29
  %v690 = vpop.permute.xlu0 %689
  %691 = vrot.lane.b32.xlu0 %v672, 29
  %v692 = vpop.permute.xlu0 %691
  %693 = vrot.lane.b32.xlu0 %v673, 29
  %v694 = vpop.permute.xlu0 %693
  %v695 = vsel %vm644, %v682, %v684
  %v696 = vsel %vm644, %v684, %v686
  %v697 = vsel %vm644, %v686, %v688
  %v698 = vsel %vm644, %v688, %v690
  %v699 = vsel %vm644, %v690, %v692
  %v700 = vsel %vm644, %v692, %v694
  %v708 = vadd.f32 %v695, %v696
  %v709 = vadd.f32 %v708, %v697
  %v710 = vadd.f32 %v709, %v698
  %v711 = vadd.f32 %v710, %v699
  %v712 = vadd.f32 %v711, %v700
  %v713 = vsel %vm49, %v694, 0.0
  %v714 = vadd.f32 %v712, %v713
  %715 = vadd.xlane.f32.xlu0 %v714
  %v716 = vpop.xlane.xlu0 %715
  %v717 = vmul.f32 %v666, 0.0012755102
  %v718 = vmul.f32 %v716, 0.0012755102
  %v719 = vmul.f32 %v717, %v717
  %v720 = vsub.f32 %v718, %v719
  %v721 = vadd.f32 %v720, 1e-05
  %v722 = vrsqrt.pop %v721
  %v723 = vld [vmem:[%s2] sm:$0xff]
  %v724 = vmul.f32 %v723, %v722
  %v725 = vld [vmem:[%s3] sm:$0xff]
  %v726 = vmul.f32 %v717, %v724
  %v727 = vsub.f32 %v725, %v726
  %729 = vset.pattern.permute.xlu0 0
  %730 = vperm.xlu0 %729, %v724
  %v731 = vpop.permute.xlu0 %730
  %v733 = vmul.f32 %v616, %v731
  %v734 = vmul.f32 %v617, %v731
  %v735 = vmul.f32 %v618, %v731
  %v736 = vmul.f32 %v619, %v731
  %v737 = vmul.f32 %v620, %v731
  %v738 = vmul.f32 %v621, %v731
  %v739 = vmul.f32 %v622, %v731
  %741 = vset.pattern.permute.xlu0 0
  %742 = vperm.xlu0 %741, %v727
  %v743 = vpop.permute.xlu0 %742
  %v745 = vadd.f32 %v733, %v743
  %v746 = vadd.f32 %v734, %v743
  %v747 = vadd.f32 %v735, %v743
  %v748 = vadd.f32 %v736, %v743
  %v749 = vadd.f32 %v737, %v743
  %v750 = vadd.f32 %v738, %v743
  %v751 = vadd.f32 %v739, %v743
  %759 = vrot.lane.b32.xlu0 %v745, 29
  %v760 = vpop.permute.xlu0 %759
  %761 = vrot.lane.b32.xlu0 %v746, 29
  %v762 = vpop.permute.xlu0 %761
  %763 = vrot.lane.b32.xlu0 %v747, 29
  %v764 = vpop.permute.xlu0 %763
  %765 = vrot.lane.b32.xlu0 %v748, 29
  %v766 = vpop.permute.xlu0 %765
  %767 = vrot.lane.b32.xlu0 %v749, 29
  %v768 = vpop.permute.xlu0 %767
  %769 = vrot.lane.b32.xlu0 %v750, 29
  %v770 = vpop.permute.xlu0 %769
  %771 = vrot.lane.b32.xlu0 %v751, 29
  %v772 = vpop.permute.xlu0 %771
  %v773 = vsel %vm644, %v760, %v762
  %v774 = vsel %vm644, %v762, %v764
  %v775 = vsel %vm644, %v764, %v766
  %v776 = vsel %vm644, %v766, %v768
  %v777 = vsel %vm644, %v768, %v770
  %v778 = vsel %vm644, %v770, %v772
  %786 = vst [vmem:[%s5] sm:$0xff] %v773
  %787 = vst [vmem:[%s5 + $0x8] sm:$0xff] %v774
  %788 = vst [vmem:[%s5 + $0x10] sm:$0xff] %v775
  %789 = vst [vmem:[%s5 + $0x18] sm:$0xff] %v776
  %790 = vst [vmem:[%s5 + $0x20] sm:$0xff] %v777
  %791 = vst [vmem:[%s5 + $0x28] sm:$0xff] %v778
  %792 = vst.msk [vmem:[%s5 + $0x30] sm:$0xff] %vm49, %v772
  %v793 = vld [vmem:[%s0 + $0x38] sm:$0xff]
  %v794 = vld [vmem:[%s0 + $0x40] sm:$0xff]
  %v795 = vld [vmem:[%s0 + $0x48] sm:$0xff]
  %v796 = vld [vmem:[%s0 + $0x50] sm:$0xff]
  %v797 = vld [vmem:[%s0 + $0x58] sm:$0xff]
  %v798 = vld [vmem:[%s0 + $0x60] sm:$0xff]
  %v799 = vld [vmem:[%s0 + $0x68] sm:$0xff]
  %v800 = vmax.f32 %v793, 0.0
  %v801 = vmax.f32 %v794, 0.0
  %v802 = vmax.f32 %v795, 0.0
  %v803 = vmax.f32 %v796, 0.0
  %v804 = vmax.f32 %v797, 0.0
  %v805 = vmax.f32 %v798, 0.0
  %v806 = vmax.f32 %v799, 0.0
  %807 = vst [vmem:[#allocation2 + $0x8] sm:$0xff] %v800
  %808 = vst [vmem:[#allocation2 + $0x10] sm:$0xff] %v801
  %809 = vst [vmem:[#allocation2 + $0x18] sm:$0xff] %v802
  %810 = vst [vmem:[#allocation2 + $0x20] sm:$0xff] %v803
  %811 = vst [vmem:[#allocation2 + $0x28] sm:$0xff] %v804
  %812 = vst [vmem:[#allocation2 + $0x30] sm:$0xff] %v805
  %813 = vst.msk [vmem:[#allocation2 + $0x38] sm:$0xff] %vm49, %v806
  %v814 = vld [vmem:[#allocation2] sm:$0xff]
  %v815 = vld [vmem:[#allocation2 + $0x8] sm:$0xff]
  %v816 = vld [vmem:[#allocation2 + $0x10] sm:$0xff]
  %v817 = vld [vmem:[#allocation2 + $0x18] sm:$0xff]
  %v818 = vld [vmem:[#allocation2 + $0x20] sm:$0xff]
  %v819 = vld [vmem:[#allocation2 + $0x28] sm:$0xff]
  %v820 = vld [vmem:[#allocation2 + $0x30] sm:$0xff]
  %v821 = vld [vmem:[#allocation2 + $0x38] sm:$0xff]
  %v822 = vld [vmem:[%s1 + $0x8] sm:$0xff]
  %v823 = vmul.f32 %v814, %v90
  %v824 = vmul.f32 %v815, %v104
  %v825 = vmul.f32 %v816, %v105
  %v826 = vmul.f32 %v817, %v106
  %v827 = vmul.f32 %v818, %v107
  %v828 = vmul.f32 %v819, %v108
  %v829 = vmul.f32 %v820, %v109
  %v830 = vmul.f32 %v821, %v102
  %v831 = vmul.f32 %v814, %v127
  %v832 = vmul.f32 %v815, %v141
  %v833 = vmul.f32 %v816, %v142
  %v834 = vmul.f32 %v817, %v143
  %v835 = vmul.f32 %v818, %v144
  %v836 = vmul.f32 %v819, %v145
  %v837 = vmul.f32 %v820, %v146
  %v838 = vmul.f32 %v821, %v139
  %840 = vset.pattern.permute.xlu0 0
  %841 = vperm.xlu0 %840, %v822
  %v842 = vpop.permute.xlu0 %841
  %v844 = vmul.f32 %v823, %v842
  %v845 = vmul.f32 %v824, %v842
  %v846 = vmul.f32 %v825, %v842
  %v847 = vmul.f32 %v826, %v842
  %v848 = vmul.f32 %v827, %v842
  %v849 = vmul.f32 %v828, %v842
  %v850 = vmul.f32 %v829, %v842
  %851 = vset.pattern.permute.xlu0 1
  %852 = vperm.xlu0 %851, %v822
  %v853 = vpop.permute.xlu0 %852
  %v855 = vmul.f32 %v814, %v853
  %v856 = vmul.f32 %v815, %v853
  %v857 = vmul.f32 %v816, %v853
  %v858 = vmul.f32 %v817, %v853
  %v859 = vmul.f32 %v818, %v853
  %v860 = vmul.f32 %v819, %v853
  %v861 = vmul.f32 %v820, %v853
  %v862 = vmul.f32 %v821, %v853
  %871 = vrot.lane.b32.xlu0 %v855, 127
  %v872 = vpop.permute.xlu0 %871
  %873 = vrot.lane.b32.xlu0 %v856, 127
  %v874 = vpop.permute.xlu0 %873
  %875 = vrot.lane.b32.xlu0 %v857, 127
  %v876 = vpop.permute.xlu0 %875
  %877 = vrot.lane.b32.xlu0 %v858, 127
  %v878 = vpop.permute.xlu0 %877
  %879 = vrot.lane.b32.xlu0 %v859, 127
  %v880 = vpop.permute.xlu0 %879
  %881 = vrot.lane.b32.xlu0 %v860, 127
  %v882 = vpop.permute.xlu0 %881
  %883 = vrot.lane.b32.xlu0 %v861, 127
  %v884 = vpop.permute.xlu0 %883
  %885 = vrot.lane.b32.xlu0 %v862, 127
  %v886 = vpop.permute.xlu0 %885
  %v887 = vsel %vm211, %v872, %v874
  %v888 = vsel %vm211, %v874, %v876
  %v889 = vsel %vm211, %v876, %v878
  %v890 = vsel %vm211, %v878, %v880
  %v891 = vsel %vm211, %v880, %v882
  %v892 = vsel %vm211, %v882, %v884
  %v893 = vsel %vm211, %v884, %v886
  %v901 = vadd.f32 %v844, %v887
  %v902 = vadd.f32 %v845, %v888
  %v903 = vadd.f32 %v846, %v889
  %v904 = vadd.f32 %v847, %v890
  %v905 = vadd.f32 %v848, %v891
  %v906 = vadd.f32 %v849, %v892
  %v907 = vadd.f32 %v850, %v893
  %908 = vset.pattern.permute.xlu0 2
  %909 = vperm.xlu0 %908, %v822
  %v910 = vpop.permute.xlu0 %909
  %v912 = vmul.f32 %v831, %v910
  %v913 = vmul.f32 %v832, %v910
  %v914 = vmul.f32 %v833, %v910
  %v915 = vmul.f32 %v834, %v910
  %v916 = vmul.f32 %v835, %v910
  %v917 = vmul.f32 %v836, %v910
  %v918 = vmul.f32 %v837, %v910
  %v919 = vmul.f32 %v838, %v910
  %928 = vrot.lane.b32.xlu0 %v912, 126
  %v929 = vpop.permute.xlu0 %928
  %930 = vrot.lane.b32.xlu0 %v913, 126
  %v931 = vpop.permute.xlu0 %930
  %932 = vrot.lane.b32.xlu0 %v914, 126
  %v933 = vpop.permute.xlu0 %932
  %934 = vrot.lane.b32.xlu0 %v915, 126
  %v935 = vpop.permute.xlu0 %934
  %936 = vrot.lane.b32.xlu0 %v916, 126
  %v937 = vpop.permute.xlu0 %936
  %938 = vrot.lane.b32.xlu0 %v917, 126
  %v939 = vpop.permute.xlu0 %938
  %940 = vrot.lane.b32.xlu0 %v918, 126
  %v941 = vpop.permute.xlu0 %940
  %942 = vrot.lane.b32.xlu0 %v919, 126
  %v943 = vpop.permute.xlu0 %942
  %v944 = vsel %vm269, %v929, %v931
  %v945 = vsel %vm269, %v931, %v933
  %v946 = vsel %vm269, %v933, %v935
  %v947 = vsel %vm269, %v935, %v937
  %v948 = vsel %vm269, %v937, %v939
  %v949 = vsel %vm269, %v939, %v941
  %v950 = vsel %vm269, %v941, %v943
  %v958 = vadd.f32 %v901, %v944
  %v959 = vadd.f32 %v902, %v945
  %v960 = vadd.f32 %v903, %v946
  %v961 = vadd.f32 %v904, %v947
  %v962 = vadd.f32 %v905, %v948
  %v963 = vadd.f32 %v906, %v949
  %v964 = vadd.f32 %v907, %v950
  %965 = vset.pattern.permute.xlu0 3
  %966 = vperm.xlu0 %965, %v822
  %v967 = vpop.permute.xlu0 %966
  %v969 = vmul.f32 %v823, %v967
  %v970 = vmul.f32 %v824, %v967
  %v971 = vmul.f32 %v825, %v967
  %v972 = vmul.f32 %v826, %v967
  %v973 = vmul.f32 %v827, %v967
  %v974 = vmul.f32 %v828, %v967
  %v975 = vmul.f32 %v829, %v967
  %v976 = vmul.f32 %v830, %v967
  %977 = vset.pattern.permute.xlu0 4
  %978 = vperm.xlu0 %977, %v822
  %v979 = vpop.permute.xlu0 %978
  %v981 = vmul.f32 %v814, %v979
  %v982 = vmul.f32 %v815, %v979
  %v983 = vmul.f32 %v816, %v979
  %v984 = vmul.f32 %v817, %v979
  %v985 = vmul.f32 %v818, %v979
  %v986 = vmul.f32 %v819, %v979
  %v987 = vmul.f32 %v820, %v979
  %v988 = vmul.f32 %v821, %v979
  %997 = vrot.lane.b32.xlu0 %v981, 127
  %v998 = vpop.permute.xlu0 %997
  %999 = vrot.lane.b32.xlu0 %v982, 127
  %v1000 = vpop.permute.xlu0 %999
  %1001 = vrot.lane.b32.xlu0 %v983, 127
  %v1002 = vpop.permute.xlu0 %1001
  %1003 = vrot.lane.b32.xlu0 %v984, 127
  %v1004 = vpop.permute.xlu0 %1003
  %1005 = vrot.lane.b32.xlu0 %v985, 127
  %v1006 = vpop.permute.xlu0 %1005
  %1007 = vrot.lane.b32.xlu0 %v986, 127
  %v1008 = vpop.permute.xlu0 %1007
  %1009 = vrot.lane.b32.xlu0 %v987, 127
  %v1010 = vpop.permute.xlu0 %1009
  %1011 = vrot.lane.b32.xlu0 %v988, 127
  %v1012 = vpop.permute.xlu0 %1011
  %v1013 = vsel %vm211, %v998, %v1000
  %v1014 = vsel %vm211, %v1000, %v1002
  %v1015 = vsel %vm211, %v1002, %v1004
  %v1016 = vsel %vm211, %v1004, %v1006
  %v1017 = vsel %vm211, %v1006, %v1008
  %v1018 = vsel %vm211, %v1008, %v1010
  %v1019 = vsel %vm211, %v1010, %v1012
  %v1028 = vadd.f32 %v969, %v1013
  %v1029 = vadd.f32 %v970, %v1014
  %v1030 = vadd.f32 %v971, %v1015
  %v1031 = vadd.f32 %v972, %v1016
  %v1032 = vadd.f32 %v973, %v1017
  %v1033 = vadd.f32 %v974, %v1018
  %v1034 = vadd.f32 %v975, %v1019
  %v1035 = vadd.f32 %v976, %v1012
  %1036 = vset.pattern.permute.xlu0 5
  %1037 = vperm.xlu0 %1036, %v822
  %v1038 = vpop.permute.xlu0 %1037
  %v1040 = vmul.f32 %v831, %v1038
  %v1041 = vmul.f32 %v832, %v1038
  %v1042 = vmul.f32 %v833, %v1038
  %v1043 = vmul.f32 %v834, %v1038
  %v1044 = vmul.f32 %v835, %v1038
  %v1045 = vmul.f32 %v836, %v1038
  %v1046 = vmul.f32 %v837, %v1038
  %v1047 = vmul.f32 %v838, %v1038
  %1056 = vrot.lane.b32.xlu0 %v1040, 126
  %v1057 = vpop.permute.xlu0 %1056
  %1058 = vrot.lane.b32.xlu0 %v1041, 126
  %v1059 = vpop.permute.xlu0 %1058
  %1060 = vrot.lane.b32.xlu0 %v1042, 126
  %v1061 = vpop.permute.xlu0 %1060
  %1062 = vrot.lane.b32.xlu0 %v1043, 126
  %v1063 = vpop.permute.xlu0 %1062
  %1064 = vrot.lane.b32.xlu0 %v1044, 126
  %v1065 = vpop.permute.xlu0 %1064
  %1066 = vrot.lane.b32.xlu0 %v1045, 126
  %v1067 = vpop.permute.xlu0 %1066
  %1068 = vrot.lane.b32.xlu0 %v1046, 126
  %v1069 = vpop.permute.xlu0 %1068
  %1070 = vrot.lane.b32.xlu0 %v1047, 126
  %v1071 = vpop.permute.xlu0 %1070
  %v1072 = vsel %vm269, %v1057, %v1059
  %v1073 = vsel %vm269, %v1059, %v1061
  %v1074 = vsel %vm269, %v1061, %v1063
  %v1075 = vsel %vm269, %v1063, %v1065
  %v1076 = vsel %vm269, %v1065, %v1067
  %v1077 = vsel %vm269, %v1067, %v1069
  %v1078 = vsel %vm269, %v1069, %v1071
  %v1087 = vadd.f32 %v1028, %v1072
  %v1088 = vadd.f32 %v1029, %v1073
  %v1089 = vadd.f32 %v1030, %v1074
  %v1090 = vadd.f32 %v1031, %v1075
  %v1091 = vadd.f32 %v1032, %v1076
  %v1092 = vadd.f32 %v1033, %v1077
  %v1093 = vadd.f32 %v1034, %v1078
  %v1094 = vadd.f32 %v1035, %v1071
  %1103 = vrot.lane.b32.xlu0 %v1087, 100
  %v1104 = vpop.permute.xlu0 %1103
  %1105 = vrot.lane.b32.xlu0 %v1088, 100
  %v1106 = vpop.permute.xlu0 %1105
  %1107 = vrot.lane.b32.xlu0 %v1089, 100
  %v1108 = vpop.permute.xlu0 %1107
  %1109 = vrot.lane.b32.xlu0 %v1090, 100
  %v1110 = vpop.permute.xlu0 %1109
  %1111 = vrot.lane.b32.xlu0 %v1091, 100
  %v1112 = vpop.permute.xlu0 %1111
  %1113 = vrot.lane.b32.xlu0 %v1092, 100
  %v1114 = vpop.permute.xlu0 %1113
  %1115 = vrot.lane.b32.xlu0 %v1093, 100
  %v1116 = vpop.permute.xlu0 %1115
  %1117 = vrot.lane.b32.xlu0 %v1094, 100
  %v1118 = vpop.permute.xlu0 %1117
  %v1119 = vsel %vm140, %v1104, %v1106
  %v1120 = vsel %vm140, %v1106, %v1108
  %v1121 = vsel %vm140, %v1108, %v1110
  %v1122 = vsel %vm140, %v1110, %v1112
  %v1123 = vsel %vm140, %v1112, %v1114
  %v1124 = vsel %vm140, %v1114, %v1116
  %v1125 = vsel %vm140, %v1116, %v1118
  %v1133 = vadd.f32 %v958, %v1119
  %v1134 = vadd.f32 %v959, %v1120
  %v1135 = vadd.f32 %v960, %v1121
  %v1136 = vadd.f32 %v961, %v1122
  %v1137 = vadd.f32 %v962, %v1123
  %v1138 = vadd.f32 %v963, %v1124
  %v1139 = vadd.f32 %v964, %v1125
  %1140 = vset.pattern.permute.xlu0 6
  %1141 = vperm.xlu0 %1140, %v822
  %v1142 = vpop.permute.xlu0 %1141
  %v1144 = vmul.f32 %v824, %v1142
  %v1145 = vmul.f32 %v825, %v1142
  %v1146 = vmul.f32 %v826, %v1142
  %v1147 = vmul.f32 %v827, %v1142
  %v1148 = vmul.f32 %v828, %v1142
  %v1149 = vmul.f32 %v829, %v1142
  %v1150 = vmul.f32 %v830, %v1142
  %1151 = vset.pattern.permute.xlu0 7
  %1152 = vperm.xlu0 %1151, %v822
  %v1153 = vpop.permute.xlu0 %1152
  %v1155 = vmul.f32 %v815, %v1153
  %v1156 = vmul.f32 %v816, %v1153
  %v1157 = vmul.f32 %v817, %v1153
  %v1158 = vmul.f32 %v818, %v1153
  %v1159 = vmul.f32 %v819, %v1153
  %v1160 = vmul.f32 %v820, %v1153
  %v1161 = vmul.f32 %v821, %v1153
  %1169 = vrot.lane.b32.xlu0 %v1155, 127
  %v1170 = vpop.permute.xlu0 %1169
  %1171 = vrot.lane.b32.xlu0 %v1156, 127
  %v1172 = vpop.permute.xlu0 %1171
  %1173 = vrot.lane.b32.xlu0 %v1157, 127
  %v1174 = vpop.permute.xlu0 %1173
  %1175 = vrot.lane.b32.xlu0 %v1158, 127
  %v1176 = vpop.permute.xlu0 %1175
  %1177 = vrot.lane.b32.xlu0 %v1159, 127
  %v1178 = vpop.permute.xlu0 %1177
  %1179 = vrot.lane.b32.xlu0 %v1160, 127
  %v1180 = vpop.permute.xlu0 %1179
  %1181 = vrot.lane.b32.xlu0 %v1161, 127
  %v1182 = vpop.permute.xlu0 %1181
  %v1183 = vsel %vm211, %v1170, %v1172
  %v1184 = vsel %vm211, %v1172, %v1174
  %v1185 = vsel %vm211, %v1174, %v1176
  %v1186 = vsel %vm211, %v1176, %v1178
  %v1187 = vsel %vm211, %v1178, %v1180
  %v1188 = vsel %vm211, %v1180, %v1182
  %v1196 = vadd.f32 %v1144, %v1183
  %v1197 = vadd.f32 %v1145, %v1184
  %v1198 = vadd.f32 %v1146, %v1185
  %v1199 = vadd.f32 %v1147, %v1186
  %v1200 = vadd.f32 %v1148, %v1187
  %v1201 = vadd.f32 %v1149, %v1188
  %v1202 = vadd.f32 %v1150, %v1182
  %1203 = vset.pattern.permute.xlu0 8
  %1204 = vperm.xlu0 %1203, %v822
  %v1205 = vpop.permute.xlu0 %1204
  %v1207 = vmul.f32 %v832, %v1205
  %v1208 = vmul.f32 %v833, %v1205
  %v1209 = vmul.f32 %v834, %v1205
  %v1210 = vmul.f32 %v835, %v1205
  %v1211 = vmul.f32 %v836, %v1205
  %v1212 = vmul.f32 %v837, %v1205
  %v1213 = vmul.f32 %v838, %v1205
  %1221 = vrot.lane.b32.xlu0 %v1207, 126
  %v1222 = vpop.permute.xlu0 %1221
  %1223 = vrot.lane.b32.xlu0 %v1208, 126
  %v1224 = vpop.permute.xlu0 %1223
  %1225 = vrot.lane.b32.xlu0 %v1209, 126
  %v1226 = vpop.permute.xlu0 %1225
  %1227 = vrot.lane.b32.xlu0 %v1210, 126
  %v1228 = vpop.permute.xlu0 %1227
  %1229 = vrot.lane.b32.xlu0 %v1211, 126
  %v1230 = vpop.permute.xlu0 %1229
  %1231 = vrot.lane.b32.xlu0 %v1212, 126
  %v1232 = vpop.permute.xlu0 %1231
  %1233 = vrot.lane.b32.xlu0 %v1213, 126
  %v1234 = vpop.permute.xlu0 %1233
  %v1235 = vsel %vm269, %v1222, %v1224
  %v1236 = vsel %vm269, %v1224, %v1226
  %v1237 = vsel %vm269, %v1226, %v1228
  %v1238 = vsel %vm269, %v1228, %v1230
  %v1239 = vsel %vm269, %v1230, %v1232
  %v1240 = vsel %vm269, %v1232, %v1234
  %v1248 = vadd.f32 %v1196, %v1235
  %v1249 = vadd.f32 %v1197, %v1236
  %v1250 = vadd.f32 %v1198, %v1237
  %v1251 = vadd.f32 %v1199, %v1238
  %v1252 = vadd.f32 %v1200, %v1239
  %v1253 = vadd.f32 %v1201, %v1240
  %v1254 = vadd.f32 %v1202, %v1234
  %1262 = vrot.lane.b32.xlu0 %v1248, 72
  %v1263 = vpop.permute.xlu0 %1262
  %1264 = vrot.lane.b32.xlu0 %v1249, 72
  %v1265 = vpop.permute.xlu0 %1264
  %1266 = vrot.lane.b32.xlu0 %v1250, 72
  %v1267 = vpop.permute.xlu0 %1266
  %1268 = vrot.lane.b32.xlu0 %v1251, 72
  %v1269 = vpop.permute.xlu0 %1268
  %1270 = vrot.lane.b32.xlu0 %v1252, 72
  %v1271 = vpop.permute.xlu0 %1270
  %1272 = vrot.lane.b32.xlu0 %v1253, 72
  %v1273 = vpop.permute.xlu0 %1272
  %1274 = vrot.lane.b32.xlu0 %v1254, 72
  %v1275 = vpop.permute.xlu0 %1274
  %v1276 = vsel %vm602, %v1263, %v1265
  %v1277 = vsel %vm602, %v1265, %v1267
  %v1278 = vsel %vm602, %v1267, %v1269
  %v1279 = vsel %vm602, %v1269, %v1271
  %v1280 = vsel %vm602, %v1271, %v1273
  %v1281 = vsel %vm602, %v1273, %v1275
  %v1289 = vadd.f32 %v1133, %v1263
  %v1290 = vadd.f32 %v1134, %v1276
  %v1291 = vadd.f32 %v1135, %v1277
  %v1292 = vadd.f32 %v1136, %v1278
  %v1293 = vadd.f32 %v1137, %v1279
  %v1294 = vadd.f32 %v1138, %v1280
  %v1295 = vadd.f32 %v1139, %v1281
  %1303 = vrot.lane.b32.xlu0 %v1289, 29
  %v1304 = vpop.permute.xlu0 %1303
  %1305 = vrot.lane.b32.xlu0 %v1290, 29
  %v1306 = vpop.permute.xlu0 %1305
  %1307 = vrot.lane.b32.xlu0 %v1291, 29
  %v1308 = vpop.permute.xlu0 %1307
  %1309 = vrot.lane.b32.xlu0 %v1292, 29
  %v1310 = vpop.permute.xlu0 %1309
  %1311 = vrot.lane.b32.xlu0 %v1293, 29
  %v1312 = vpop.permute.xlu0 %1311
  %1313 = vrot.lane.b32.xlu0 %v1294, 29
  %v1314 = vpop.permute.xlu0 %1313
  %1315 = vrot.lane.b32.xlu0 %v1295, 29
  %v1316 = vpop.permute.xlu0 %1315
  %v1317 = vsel %vm644, %v1304, %v1306
  %v1318 = vsel %vm644, %v1306, %v1308
  %v1319 = vsel %vm644, %v1308, %v1310
  %v1320 = vsel %vm644, %v1310, %v1312
  %v1321 = vsel %vm644, %v1312, %v1314
  %v1322 = vsel %vm644, %v1314, %v1316
  %v1330 = vadd.f32 %v1317, %v1318
  %v1331 = vadd.f32 %v1330, %v1319
  %v1332 = vadd.f32 %v1331, %v1320
  %v1333 = vadd.f32 %v1332, %v1321
  %v1334 = vadd.f32 %v1333, %v1322
  %v1335 = vsel %vm49, %v1316, 0.0
  %v1336 = vadd.f32 %v1334, %v1335
  %1337 = vadd.xlane.f32.xlu0 %v1336
  %v1338 = vpop.xlane.xlu0 %1337
  %v1339 = vmul.f32 %v1289, %v1289
  %v1340 = vmul.f32 %v1290, %v1290
  %v1341 = vmul.f32 %v1291, %v1291
  %v1342 = vmul.f32 %v1292, %v1292
  %v1343 = vmul.f32 %v1293, %v1293
  %v1344 = vmul.f32 %v1294, %v1294
  %v1345 = vmul.f32 %v1295, %v1295
  %1353 = vrot.lane.b32.xlu0 %v1339, 29
  %v1354 = vpop.permute.xlu0 %1353
  %1355 = vrot.lane.b32.xlu0 %v1340, 29
  %v1356 = vpop.permute.xlu0 %1355
  %1357 = vrot.lane.b32.xlu0 %v1341, 29
  %v1358 = vpop.permute.xlu0 %1357
  %1359 = vrot.lane.b32.xlu0 %v1342, 29
  %v1360 = vpop.permute.xlu0 %1359
  %1361 = vrot.lane.b32.xlu0 %v1343, 29
  %v1362 = vpop.permute.xlu0 %1361
  %1363 = vrot.lane.b32.xlu0 %v1344, 29
  %v1364 = vpop.permute.xlu0 %1363
  %1365 = vrot.lane.b32.xlu0 %v1345, 29
  %v1366 = vpop.permute.xlu0 %1365
  %v1367 = vsel %vm644, %v1354, %v1356
  %v1368 = vsel %vm644, %v1356, %v1358
  %v1369 = vsel %vm644, %v1358, %v1360
  %v1370 = vsel %vm644, %v1360, %v1362
  %v1371 = vsel %vm644, %v1362, %v1364
  %v1372 = vsel %vm644, %v1364, %v1366
  %v1380 = vadd.f32 %v1367, %v1368
  %v1381 = vadd.f32 %v1380, %v1369
  %v1382 = vadd.f32 %v1381, %v1370
  %v1383 = vadd.f32 %v1382, %v1371
  %v1384 = vadd.f32 %v1383, %v1372
  %v1385 = vsel %vm49, %v1366, 0.0
  %v1386 = vadd.f32 %v1384, %v1385
  %1387 = vadd.xlane.f32.xlu0 %v1386
  %v1388 = vpop.xlane.xlu0 %1387
  %v1389 = vmul.f32 %v1338, 0.0012755102
  %v1390 = vmul.f32 %v1388, 0.0012755102
  %v1391 = vmul.f32 %v1389, %v1389
  %v1392 = vsub.f32 %v1390, %v1391
  %v1393 = vadd.f32 %v1392, 1e-05
  %v1394 = vrsqrt.pop %v1393
  %v1395 = vld [vmem:[%s2 + $0x8] sm:$0xff]
  %v1396 = vmul.f32 %v1395, %v1394
  %v1397 = vld [vmem:[%s3 + $0x8] sm:$0xff]
  %v1398 = vmul.f32 %v1389, %v1396
  %v1399 = vsub.f32 %v1397, %v1398
  %1401 = vset.pattern.permute.xlu0 0
  %1402 = vperm.xlu0 %1401, %v1396
  %v1403 = vpop.permute.xlu0 %1402
  %v1405 = vmul.f32 %v1289, %v1403
  %v1406 = vmul.f32 %v1290, %v1403
  %v1407 = vmul.f32 %v1291, %v1403
  %v1408 = vmul.f32 %v1292, %v1403
  %v1409 = vmul.f32 %v1293, %v1403
  %v1410 = vmul.f32 %v1294, %v1403
  %v1411 = vmul.f32 %v1295, %v1403
  %1413 = vset.pattern.permute.xlu0 0
  %1414 = vperm.xlu0 %1413, %v1399
  %v1415 = vpop.permute.xlu0 %1414
  %v1417 = vadd.f32 %v1405, %v1415
  %v1418 = vadd.f32 %v1406, %v1415
  %v1419 = vadd.f32 %v1407, %v1415
  %v1420 = vadd.f32 %v1408, %v1415
  %v1421 = vadd.f32 %v1409, %v1415
  %v1422 = vadd.f32 %v1410, %v1415
  %v1423 = vadd.f32 %v1411, %v1415
  %1431 = vrot.lane.b32.xlu0 %v1417, 29
  %v1432 = vpop.permute.xlu0 %1431
  %1433 = vrot.lane.b32.xlu0 %v1418, 29
  %v1434 = vpop.permute.xlu0 %1433
  %1435 = vrot.lane.b32.xlu0 %v1419, 29
  %v1436 = vpop.permute.xlu0 %1435
  %1437 = vrot.lane.b32.xlu0 %v1420, 29
  %v1438 = vpop.permute.xlu0 %1437
  %1439 = vrot.lane.b32.xlu0 %v1421, 29
  %v1440 = vpop.permute.xlu0 %1439
  %1441 = vrot.lane.b32.xlu0 %v1422, 29
  %v1442 = vpop.permute.xlu0 %1441
  %1443 = vrot.lane.b32.xlu0 %v1423, 29
  %v1444 = vpop.permute.xlu0 %1443
  %v1445 = vsel %vm644, %v1432, %v1434
  %v1446 = vsel %vm644, %v1434, %v1436
  %v1447 = vsel %vm644, %v1436, %v1438
  %v1448 = vsel %vm644, %v1438, %v1440
  %v1449 = vsel %vm644, %v1440, %v1442
  %v1450 = vsel %vm644, %v1442, %v1444
  %1458 = vst [vmem:[%s5 + $0x38] sm:$0xff] %v1445
  %1459 = vst [vmem:[%s5 + $0x40] sm:$0xff] %v1446
  %1460 = vst [vmem:[%s5 + $0x48] sm:$0xff] %v1447
  %1461 = vst [vmem:[%s5 + $0x50] sm:$0xff] %v1448
  %1462 = vst [vmem:[%s5 + $0x58] sm:$0xff] %v1449
  %1463 = vst [vmem:[%s5 + $0x60] sm:$0xff] %v1450
  %1464 = vst.msk [vmem:[%s5 + $0x68] sm:$0xff] %vm49, %v1444
  %v1465 = vld [vmem:[%s0 + $0x70] sm:$0xff]
  %v1466 = vld [vmem:[%s0 + $0x78] sm:$0xff]
  %v1467 = vld [vmem:[%s0 + $0x80] sm:$0xff]
  %v1468 = vld [vmem:[%s0 + $0x88] sm:$0xff]
  %v1469 = vld [vmem:[%s0 + $0x90] sm:$0xff]
  %v1470 = vld [vmem:[%s0 + $0x98] sm:$0xff]
  %v1471 = vld [vmem:[%s0 + $0xa0] sm:$0xff]
  %v1472 = vmax.f32 %v1465, 0.0
  %v1473 = vmax.f32 %v1466, 0.0
  %v1474 = vmax.f32 %v1467, 0.0
  %v1475 = vmax.f32 %v1468, 0.0
  %v1476 = vmax.f32 %v1469, 0.0
  %v1477 = vmax.f32 %v1470, 0.0
  %v1478 = vmax.f32 %v1471, 0.0
  %1479 = vst [vmem:[#allocation2 + $0x8] sm:$0xff] %v1472
  %1480 = vst [vmem:[#allocation2 + $0x10] sm:$0xff] %v1473
  %1481 = vst [vmem:[#allocation2 + $0x18] sm:$0xff] %v1474
  %1482 = vst [vmem:[#allocation2 + $0x20] sm:$0xff] %v1475
  %1483 = vst [vmem:[#allocation2 + $0x28] sm:$0xff] %v1476
  %1484 = vst [vmem:[#allocation2 + $0x30] sm:$0xff] %v1477
  %1485 = vst.msk [vmem:[#allocation2 + $0x38] sm:$0xff] %vm49, %v1478
  %v1486 = vld [vmem:[#allocation2] sm:$0xff]
  %v1487 = vld [vmem:[#allocation2 + $0x8] sm:$0xff]
  %v1488 = vld [vmem:[#allocation2 + $0x10] sm:$0xff]
  %v1489 = vld [vmem:[#allocation2 + $0x18] sm:$0xff]
  %v1490 = vld [vmem:[#allocation2 + $0x20] sm:$0xff]
  %v1491 = vld [vmem:[#allocation2 + $0x28] sm:$0xff]
  %v1492 = vld [vmem:[#allocation2 + $0x30] sm:$0xff]
  %v1493 = vld [vmem:[#allocation2 + $0x38] sm:$0xff]
  %v1494 = vld [vmem:[%s1 + $0x10] sm:$0xff]
  %v1495 = vmul.f32 %v1486, %v90
  %v1496 = vmul.f32 %v1487, %v104
  %v1497 = vmul.f32 %v1488, %v105
  %v1498 = vmul.f32 %v1489, %v106
  %v1499 = vmul.f32 %v1490, %v107
  %v1500 = vmul.f32 %v1491, %v108
  %v1501 = vmul.f32 %v1492, %v109
  %v1502 = vmul.f32 %v1493, %v102
  %v1503 = vmul.f32 %v1486, %v127
  %v1504 = vmul.f32 %v1487, %v141
  %v1505 = vmul.f32 %v1488, %v142
  %v1506 = vmul.f32 %v1489, %v143
  %v1507 = vmul.f32 %v1490, %v144
  %v1508 = vmul.f32 %v1491, %v145
  %v1509 = vmul.f32 %v1492, %v146
  %v1510 = vmul.f32 %v1493, %v139
  %1512 = vset.pattern.permute.xlu0 0
  %1513 = vperm.xlu0 %1512, %v1494
  %v1514 = vpop.permute.xlu0 %1513
  %v1516 = vmul.f32 %v1495, %v1514
  %v1517 = vmul.f32 %v1496, %v1514
  %v1518 = vmul.f32 %v1497, %v1514
  %v1519 = vmul.f32 %v1498, %v1514
  %v1520 = vmul.f32 %v1499, %v1514
  %v1521 = vmul.f32 %v1500, %v1514
  %v1522 = vmul.f32 %v1501, %v1514
  %1523 = vset.pattern.permute.xlu0 1
  %1524 = vperm.xlu0 %1523, %v1494
  %v1525 = vpop.permute.xlu0 %1524
  %v1527 = vmul.f32 %v1486, %v1525
  %v1528 = vmul.f32 %v1487, %v1525
  %v1529 = vmul.f32 %v1488, %v1525
  %v1530 = vmul.f32 %v1489, %v1525
  %v1531 = vmul.f32 %v1490, %v1525
  %v1532 = vmul.f32 %v1491, %v1525
  %v1533 = vmul.f32 %v1492, %v1525
  %v1534 = vmul.f32 %v1493, %v1525
  %1543 = vrot.lane.b32.xlu0 %v1527, 127
  %v1544 = vpop.permute.xlu0 %1543
  %1545 = vrot.lane.b32.xlu0 %v1528, 127
  %v1546 = vpop.permute.xlu0 %1545
  %1547 = vrot.lane.b32.xlu0 %v1529, 127
  %v1548 = vpop.permute.xlu0 %1547
  %1549 = vrot.lane.b32.xlu0 %v1530, 127
  %v1550 = vpop.permute.xlu0 %1549
  %1551 = vrot.lane.b32.xlu0 %v1531, 127
  %v1552 = vpop.permute.xlu0 %1551
  %1553 = vrot.lane.b32.xlu0 %v1532, 127
  %v1554 = vpop.permute.xlu0 %1553
  %1555 = vrot.lane.b32.xlu0 %v1533, 127
  %v1556 = vpop.permute.xlu0 %1555
  %1557 = vrot.lane.b32.xlu0 %v1534, 127
  %v1558 = vpop.permute.xlu0 %1557
  %v1559 = vsel %vm211, %v1544, %v1546
  %v1560 = vsel %vm211, %v1546, %v1548
  %v1561 = vsel %vm211, %v1548, %v1550
  %v1562 = vsel %vm211, %v1550, %v1552
  %v1563 = vsel %vm211, %v1552, %v1554
  %v1564 = vsel %vm211, %v1554, %v1556
  %v1565 = vsel %vm211, %v1556, %v1558
  %v1573 = vadd.f32 %v1516, %v1559
  %v1574 = vadd.f32 %v1517, %v1560
  %v1575 = vadd.f32 %v1518, %v1561
  %v1576 = vadd.f32 %v1519, %v1562
  %v1577 = vadd.f32 %v1520, %v1563
  %v1578 = vadd.f32 %v1521, %v1564
  %v1579 = vadd.f32 %v1522, %v1565
  %1580 = vset.pattern.permute.xlu0 2
  %1581 = vperm.xlu0 %1580, %v1494
  %v1582 = vpop.permute.xlu0 %1581
  %v1584 = vmul.f32 %v1503, %v1582
  %v1585 = vmul.f32 %v1504, %v1582
  %v1586 = vmul.f32 %v1505, %v1582
  %v1587 = vmul.f32 %v1506, %v1582
  %v1588 = vmul.f32 %v1507, %v1582
  %v1589 = vmul.f32 %v1508, %v1582
  %v1590 = vmul.f32 %v1509, %v1582
  %v1591 = vmul.f32 %v1510, %v1582
  %1600 = vrot.lane.b32.xlu0 %v1584, 126
  %v1601 = vpop.permute.xlu0 %1600
  %1602 = vrot.lane.b32.xlu0 %v1585, 126
  %v1603 = vpop.permute.xlu0 %1602
  %1604 = vrot.lane.b32.xlu0 %v1586, 126
  %v1605 = vpop.permute.xlu0 %1604
  %1606 = vrot.lane.b32.xlu0 %v1587, 126
  %v1607 = vpop.permute.xlu0 %1606
  %1608 = vrot.lane.b32.xlu0 %v1588, 126
  %v1609 = vpop.permute.xlu0 %1608
  %1610 = vrot.lane.b32.xlu0 %v1589, 126
  %v1611 = vpop.permute.xlu0 %1610
  %1612 = vrot.lane.b32.xlu0 %v1590, 126
  %v1613 = vpop.permute.xlu0 %1612
  %1614 = vrot.lane.b32.xlu0 %v1591, 126
  %v1615 = vpop.permute.xlu0 %1614
  %v1616 = vsel %vm269, %v1601, %v1603
  %v1617 = vsel %vm269, %v1603, %v1605
  %v1618 = vsel %vm269, %v1605, %v1607
  %v1619 = vsel %vm269, %v1607, %v1609
  %v1620 = vsel %vm269, %v1609, %v1611
  %v1621 = vsel %vm269, %v1611, %v1613
  %v1622 = vsel %vm269, %v1613, %v1615
  %v1630 = vadd.f32 %v1573, %v1616
  %v1631 = vadd.f32 %v1574, %v1617
  %v1632 = vadd.f32 %v1575, %v1618
  %v1633 = vadd.f32 %v1576, %v1619
  %v1634 = vadd.f32 %v1577, %v1620
  %v1635 = vadd.f32 %v1578, %v1621
  %v1636 = vadd.f32 %v1579, %v1622
  %1637 = vset.pattern.permute.xlu0 3
  %1638 = vperm.xlu0 %1637, %v1494
  %v1639 = vpop.permute.xlu0 %1638
  %v1641 = vmul.f32 %v1495, %v1639
  %v1642 = vmul.f32 %v1496, %v1639
  %v1643 = vmul.f32 %v1497, %v1639
  %v1644 = vmul.f32 %v1498, %v1639
  %v1645 = vmul.f32 %v1499, %v1639
  %v1646 = vmul.f32 %v1500, %v1639
  %v1647 = vmul.f32 %v1501, %v1639
  %v1648 = vmul.f32 %v1502, %v1639
  %1649 = vset.pattern.permute.xlu0 4
  %1650 = vperm.xlu0 %1649, %v1494
  %v1651 = vpop.permute.xlu0 %1650
  %v1653 = vmul.f32 %v1486, %v1651
  %v1654 = vmul.f32 %v1487, %v1651
  %v1655 = vmul.f32 %v1488, %v1651
  %v1656 = vmul.f32 %v1489, %v1651
  %v1657 = vmul.f32 %v1490, %v1651
  %v1658 = vmul.f32 %v1491, %v1651
  %v1659 = vmul.f32 %v1492, %v1651
  %v1660 = vmul.f32 %v1493, %v1651
  %1669 = vrot.lane.b32.xlu0 %v1653, 127
  %v1670 = vpop.permute.xlu0 %1669
  %1671 = vrot.lane.b32.xlu0 %v1654, 127
  %v1672 = vpop.permute.xlu0 %1671
  %1673 = vrot.lane.b32.xlu0 %v1655, 127
  %v1674 = vpop.permute.xlu0 %1673
  %1675 = vrot.lane.b32.xlu0 %v1656, 127
  %v1676 = vpop.permute.xlu0 %1675
  %1677 = vrot.lane.b32.xlu0 %v1657, 127
  %v1678 = vpop.permute.xlu0 %1677
  %1679 = vrot.lane.b32.xlu0 %v1658, 127
  %v1680 = vpop.permute.xlu0 %1679
  %1681 = vrot.lane.b32.xlu0 %v1659, 127
  %v1682 = vpop.permute.xlu0 %1681
  %1683 = vrot.lane.b32.xlu0 %v1660, 127
  %v1684 = vpop.permute.xlu0 %1683
  %v1685 = vsel %vm211, %v1670, %v1672
  %v1686 = vsel %vm211, %v1672, %v1674
  %v1687 = vsel %vm211, %v1674, %v1676
  %v1688 = vsel %vm211, %v1676, %v1678
  %v1689 = vsel %vm211, %v1678, %v1680
  %v1690 = vsel %vm211, %v1680, %v1682
  %v1691 = vsel %vm211, %v1682, %v1684
  %v1700 = vadd.f32 %v1641, %v1685
  %v1701 = vadd.f32 %v1642, %v1686
  %v1702 = vadd.f32 %v1643, %v1687
  %v1703 = vadd.f32 %v1644, %v1688
  %v1704 = vadd.f32 %v1645, %v1689
  %v1705 = vadd.f32 %v1646, %v1690
  %v1706 = vadd.f32 %v1647, %v1691
  %v1707 = vadd.f32 %v1648, %v1684
  %1708 = vset.pattern.permute.xlu0 5
  %1709 = vperm.xlu0 %1708, %v1494
  %v1710 = vpop.permute.xlu0 %1709
  %v1712 = vmul.f32 %v1503, %v1710
  %v1713 = vmul.f32 %v1504, %v1710
  %v1714 = vmul.f32 %v1505, %v1710
  %v1715 = vmul.f32 %v1506, %v1710
  %v1716 = vmul.f32 %v1507, %v1710
  %v1717 = vmul.f32 %v1508, %v1710
  %v1718 = vmul.f32 %v1509, %v1710
  %v1719 = vmul.f32 %v1510, %v1710
  %1728 = vrot.lane.b32.xlu0 %v1712, 126
  %v1729 = vpop.permute.xlu0 %1728
  %1730 = vrot.lane.b32.xlu0 %v1713, 126
  %v1731 = vpop.permute.xlu0 %1730
  %1732 = vrot.lane.b32.xlu0 %v1714, 126
  %v1733 = vpop.permute.xlu0 %1732
  %1734 = vrot.lane.b32.xlu0 %v1715, 126
  %v1735 = vpop.permute.xlu0 %1734
  %1736 = vrot.lane.b32.xlu0 %v1716, 126
  %v1737 = vpop.permute.xlu0 %1736
  %1738 = vrot.lane.b32.xlu0 %v1717, 126
  %v1739 = vpop.permute.xlu0 %1738
  %1740 = vrot.lane.b32.xlu0 %v1718, 126
  %v1741 = vpop.permute.xlu0 %1740
  %1742 = vrot.lane.b32.xlu0 %v1719, 126
  %v1743 = vpop.permute.xlu0 %1742
  %v1744 = vsel %vm269, %v1729, %v1731
  %v1745 = vsel %vm269, %v1731, %v1733
  %v1746 = vsel %vm269, %v1733, %v1735
  %v1747 = vsel %vm269, %v1735, %v1737
  %v1748 = vsel %vm269, %v1737, %v1739
  %v1749 = vsel %vm269, %v1739, %v1741
  %v1750 = vsel %vm269, %v1741, %v1743
  %v1759 = vadd.f32 %v1700, %v1744
  %v1760 = vadd.f32 %v1701, %v1745
  %v1761 = vadd.f32 %v1702, %v1746
  %v1762 = vadd.f32 %v1703, %v1747
  %v1763 = vadd.f32 %v1704, %v1748
  %v1764 = vadd.f32 %v1705, %v1749
  %v1765 = vadd.f32 %v1706, %v1750
  %v1766 = vadd.f32 %v1707, %v1743
  %1775 = vrot.lane.b32.xlu0 %v1759, 100
  %v1776 = vpop.permute.xlu0 %1775
  %1777 = vrot.lane.b32.xlu0 %v1760, 100
  %v1778 = vpop.permute.xlu0 %1777
  %1779 = vrot.lane.b32.xlu0 %v1761, 100
  %v1780 = vpop.permute.xlu0 %1779
  %1781 = vrot.lane.b32.xlu0 %v1762, 100
  %v1782 = vpop.permute.xlu0 %1781
  %1783 = vrot.lane.b32.xlu0 %v1763, 100
  %v1784 = vpop.permute.xlu0 %1783
  %1785 = vrot.lane.b32.xlu0 %v1764, 100
  %v1786 = vpop.permute.xlu0 %1785
  %1787 = vrot.lane.b32.xlu0 %v1765, 100
  %v1788 = vpop.permute.xlu0 %1787
  %1789 = vrot.lane.b32.xlu0 %v1766, 100
  %v1790 = vpop.permute.xlu0 %1789
  %v1791 = vsel %vm140, %v1776, %v1778
  %v1792 = vsel %vm140, %v1778, %v1780
  %v1793 = vsel %vm140, %v1780, %v1782
  %v1794 = vsel %vm140, %v1782, %v1784
  %v1795 = vsel %vm140, %v1784, %v1786
  %v1796 = vsel %vm140, %v1786, %v1788
  %v1797 = vsel %vm140, %v1788, %v1790
  %v1805 = vadd.f32 %v1630, %v1791
  %v1806 = vadd.f32 %v1631, %v1792
  %v1807 = vadd.f32 %v1632, %v1793
  %v1808 = vadd.f32 %v1633, %v1794
  %v1809 = vadd.f32 %v1634, %v1795
  %v1810 = vadd.f32 %v1635, %v1796
  %v1811 = vadd.f32 %v1636, %v1797
  %1812 = vset.pattern.permute.xlu0 6
  %1813 = vperm.xlu0 %1812, %v1494
  %v1814 = vpop.permute.xlu0 %1813
  %v1816 = vmul.f32 %v1496, %v1814
  %v1817 = vmul.f32 %v1497, %v1814
  %v1818 = vmul.f32 %v1498, %v1814
  %v1819 = vmul.f32 %v1499, %v1814
  %v1820 = vmul.f32 %v1500, %v1814
  %v1821 = vmul.f32 %v1501, %v1814
  %v1822 = vmul.f32 %v1502, %v1814
  %1823 = vset.pattern.permute.xlu0 7
  %1824 = vperm.xlu0 %1823, %v1494
  %v1825 = vpop.permute.xlu0 %1824
  %v1827 = vmul.f32 %v1487, %v1825
  %v1828 = vmul.f32 %v1488, %v1825
  %v1829 = vmul.f32 %v1489, %v1825
  %v1830 = vmul.f32 %v1490, %v1825
  %v1831 = vmul.f32 %v1491, %v1825
  %v1832 = vmul.f32 %v1492, %v1825
  %v1833 = vmul.f32 %v1493, %v1825
  %1841 = vrot.lane.b32.xlu0 %v1827, 127
  %v1842 = vpop.permute.xlu0 %1841
  %1843 = vrot.lane.b32.xlu0 %v1828, 127
  %v1844 = vpop.permute.xlu0 %1843
  %1845 = vrot.lane.b32.xlu0 %v1829, 127
  %v1846 = vpop.permute.xlu0 %1845
  %1847 = vrot.lane.b32.xlu0 %v1830, 127
  %v1848 = vpop.permute.xlu0 %1847
  %1849 = vrot.lane.b32.xlu0 %v1831, 127
  %v1850 = vpop.permute.xlu0 %1849
  %1851 = vrot.lane.b32.xlu0 %v1832, 127
  %v1852 = vpop.permute.xlu0 %1851
  %1853 = vrot.lane.b32.xlu0 %v1833, 127
  %v1854 = vpop.permute.xlu0 %1853
  %v1855 = vsel %vm211, %v1842, %v1844
  %v1856 = vsel %vm211, %v1844, %v1846
  %v1857 = vsel %vm211, %v1846, %v1848
  %v1858 = vsel %vm211, %v1848, %v1850
  %v1859 = vsel %vm211, %v1850, %v1852
  %v1860 = vsel %vm211, %v1852, %v1854
  %v1868 = vadd.f32 %v1816, %v1855
  %v1869 = vadd.f32 %v1817, %v1856
  %v1870 = vadd.f32 %v1818, %v1857
  %v1871 = vadd.f32 %v1819, %v1858
  %v1872 = vadd.f32 %v1820, %v1859
  %v1873 = vadd.f32 %v1821, %v1860
  %v1874 = vadd.f32 %v1822, %v1854
  %1875 = vset.pattern.permute.xlu0 8
  %1876 = vperm.xlu0 %1875, %v1494
  %v1877 = vpop.permute.xlu0 %1876
  %v1879 = vmul.f32 %v1504, %v1877
  %v1880 = vmul.f32 %v1505, %v1877
  %v1881 = vmul.f32 %v1506, %v1877
  %v1882 = vmul.f32 %v1507, %v1877
  %v1883 = vmul.f32 %v1508, %v1877
  %v1884 = vmul.f32 %v1509, %v1877
  %v1885 = vmul.f32 %v1510, %v1877
  %1893 = vrot.lane.b32.xlu0 %v1879, 126
  %v1894 = vpop.permute.xlu0 %1893
  %1895 = vrot.lane.b32.xlu0 %v1880, 126
  %v1896 = vpop.permute.xlu0 %1895
  %1897 = vrot.lane.b32.xlu0 %v1881, 126
  %v1898 = vpop.permute.xlu0 %1897
  %1899 = vrot.lane.b32.xlu0 %v1882, 126
  %v1900 = vpop.permute.xlu0 %1899
  %1901 = vrot.lane.b32.xlu0 %v1883, 126
  %v1902 = vpop.permute.xlu0 %1901
  %1903 = vrot.lane.b32.xlu0 %v1884, 126
  %v1904 = vpop.permute.xlu0 %1903
  %1905 = vrot.lane.b32.xlu0 %v1885, 126
  %v1906 = vpop.permute.xlu0 %1905
  %v1907 = vsel %vm269, %v1894, %v1896
  %v1908 = vsel %vm269, %v1896, %v1898
  %v1909 = vsel %vm269, %v1898, %v1900
  %v1910 = vsel %vm269, %v1900, %v1902
  %v1911 = vsel %vm269, %v1902, %v1904
  %v1912 = vsel %vm269, %v1904, %v1906
  %v1920 = vadd.f32 %v1868, %v1907
  %v1921 = vadd.f32 %v1869, %v1908
  %v1922 = vadd.f32 %v1870, %v1909
  %v1923 = vadd.f32 %v1871, %v1910
  %v1924 = vadd.f32 %v1872, %v1911
  %v1925 = vadd.f32 %v1873, %v1912
  %v1926 = vadd.f32 %v1874, %v1906
  %1934 = vrot.lane.b32.xlu0 %v1920, 72
  %v1935 = vpop.permute.xlu0 %1934
  %1936 = vrot.lane.b32.xlu0 %v1921, 72
  %v1937 = vpop.permute.xlu0 %1936
  %1938 = vrot.lane.b32.xlu0 %v1922, 72
  %v1939 = vpop.permute.xlu0 %1938
  %1940 = vrot.lane.b32.xlu0 %v1923, 72
  %v1941 = vpop.permute.xlu0 %1940
  %1942 = vrot.lane.b32.xlu0 %v1924, 72
  %v1943 = vpop.permute.xlu0 %1942
  %1944 = vrot.lane.b32.xlu0 %v1925, 72
  %v1945 = vpop.permute.xlu0 %1944
  %1946 = vrot.lane.b32.xlu0 %v1926, 72
  %v1947 = vpop.permute.xlu0 %1946
  %v1948 = vsel %vm602, %v1935, %v1937
  %v1949 = vsel %vm602, %v1937, %v1939
  %v1950 = vsel %vm602, %v1939, %v1941
  %v1951 = vsel %vm602, %v1941, %v1943
  %v1952 = vsel %vm602, %v1943, %v1945
  %v1953 = vsel %vm602, %v1945, %v1947
  %v1961 = vadd.f32 %v1805, %v1935
  %v1962 = vadd.f32 %v1806, %v1948
  %v1963 = vadd.f32 %v1807, %v1949
  %v1964 = vadd.f32 %v1808, %v1950
  %v1965 = vadd.f32 %v1809, %v1951
  %v1966 = vadd.f32 %v1810, %v1952
  %v1967 = vadd.f32 %v1811, %v1953
  %1975 = vrot.lane.b32.xlu0 %v1961, 29
  %v1976 = vpop.permute.xlu0 %1975
  %1977 = vrot.lane.b32.xlu0 %v1962, 29
  %v1978 = vpop.permute.xlu0 %1977
  %1979 = vrot.lane.b32.xlu0 %v1963, 29
  %v1980 = vpop.permute.xlu0 %1979
  %1981 = vrot.lane.b32.xlu0 %v1964, 29
  %v1982 = vpop.permute.xlu0 %1981
  %1983 = vrot.lane.b32.xlu0 %v1965, 29
  %v1984 = vpop.permute.xlu0 %1983
  %1985 = vrot.lane.b32.xlu0 %v1966, 29
  %v1986 = vpop.permute.xlu0 %1985
  %1987 = vrot.lane.b32.xlu0 %v1967, 29
  %v1988 = vpop.permute.xlu0 %1987
  %v1989 = vsel %vm644, %v1976, %v1978
  %v1990 = vsel %vm644, %v1978, %v1980
  %v1991 = vsel %vm644, %v1980, %v1982
  %v1992 = vsel %vm644, %v1982, %v1984
  %v1993 = vsel %vm644, %v1984, %v1986
  %v1994 = vsel %vm644, %v1986, %v1988
  %v2002 = vadd.f32 %v1989, %v1990
  %v2003 = vadd.f32 %v2002, %v1991
  %v2004 = vadd.f32 %v2003, %v1992
  %v2005 = vadd.f32 %v2004, %v1993
  %v2006 = vadd.f32 %v2005, %v1994
  %v2007 = vsel %vm49, %v1988, 0.0
  %v2008 = vadd.f32 %v2006, %v2007
  %2009 = vadd.xlane.f32.xlu0 %v2008
  %v2010 = vpop.xlane.xlu0 %2009
  %v2011 = vmul.f32 %v1961, %v1961
  %v2012 = vmul.f32 %v1962, %v1962
  %v2013 = vmul.f32 %v1963, %v1963
  %v2014 = vmul.f32 %v1964, %v1964
  %v2015 = vmul.f32 %v1965, %v1965
  %v2016 = vmul.f32 %v1966, %v1966
  %v2017 = vmul.f32 %v1967, %v1967
  %2025 = vrot.lane.b32.xlu0 %v2011, 29
  %v2026 = vpop.permute.xlu0 %2025
  %2027 = vrot.lane.b32.xlu0 %v2012, 29
  %v2028 = vpop.permute.xlu0 %2027
  %2029 = vrot.lane.b32.xlu0 %v2013, 29
  %v2030 = vpop.permute.xlu0 %2029
  %2031 = vrot.lane.b32.xlu0 %v2014, 29
  %v2032 = vpop.permute.xlu0 %2031
  %2033 = vrot.lane.b32.xlu0 %v2015, 29
  %v2034 = vpop.permute.xlu0 %2033
  %2035 = vrot.lane.b32.xlu0 %v2016, 29
  %v2036 = vpop.permute.xlu0 %2035
  %2037 = vrot.lane.b32.xlu0 %v2017, 29
  %v2038 = vpop.permute.xlu0 %2037
  %v2039 = vsel %vm644, %v2026, %v2028
  %v2040 = vsel %vm644, %v2028, %v2030
  %v2041 = vsel %vm644, %v2030, %v2032
  %v2042 = vsel %vm644, %v2032, %v2034
  %v2043 = vsel %vm644, %v2034, %v2036
  %v2044 = vsel %vm644, %v2036, %v2038
  %v2052 = vadd.f32 %v2039, %v2040
  %v2053 = vadd.f32 %v2052, %v2041
  %v2054 = vadd.f32 %v2053, %v2042
  %v2055 = vadd.f32 %v2054, %v2043
  %v2056 = vadd.f32 %v2055, %v2044
  %v2057 = vsel %vm49, %v2038, 0.0
  %v2058 = vadd.f32 %v2056, %v2057
  %2059 = vadd.xlane.f32.xlu0 %v2058
  %v2060 = vpop.xlane.xlu0 %2059
  %v2061 = vmul.f32 %v2010, 0.0012755102
  %v2062 = vmul.f32 %v2060, 0.0012755102
  %v2063 = vmul.f32 %v2061, %v2061
  %v2064 = vsub.f32 %v2062, %v2063
  %v2065 = vadd.f32 %v2064, 1e-05
  %v2066 = vrsqrt.pop %v2065
  %v2067 = vld [vmem:[%s2 + $0x10] sm:$0xff]
  %v2068 = vmul.f32 %v2067, %v2066
  %v2069 = vld [vmem:[%s3 + $0x10] sm:$0xff]
  %v2070 = vmul.f32 %v2061, %v2068
  %v2071 = vsub.f32 %v2069, %v2070
  %2073 = vset.pattern.permute.xlu0 0
  %2074 = vperm.xlu0 %2073, %v2068
  %v2075 = vpop.permute.xlu0 %2074
  %v2077 = vmul.f32 %v1961, %v2075
  %v2078 = vmul.f32 %v1962, %v2075
  %v2079 = vmul.f32 %v1963, %v2075
  %v2080 = vmul.f32 %v1964, %v2075
  %v2081 = vmul.f32 %v1965, %v2075
  %v2082 = vmul.f32 %v1966, %v2075
  %v2083 = vmul.f32 %v1967, %v2075
  %2085 = vset.pattern.permute.xlu0 0
  %2086 = vperm.xlu0 %2085, %v2071
  %v2087 = vpop.permute.xlu0 %2086
  %v2089 = vadd.f32 %v2077, %v2087
  %v2090 = vadd.f32 %v2078, %v2087
  %v2091 = vadd.f32 %v2079, %v2087
  %v2092 = vadd.f32 %v2080, %v2087
  %v2093 = vadd.f32 %v2081, %v2087
  %v2094 = vadd.f32 %v2082, %v2087
  %v2095 = vadd.f32 %v2083, %v2087
  %2103 = vrot.lane.b32.xlu0 %v2089, 29
  %v2104 = vpop.permute.xlu0 %2103
  %2105 = vrot.lane.b32.xlu0 %v2090, 29
  %v2106 = vpop.permute.xlu0 %2105
  %2107 = vrot.lane.b32.xlu0 %v2091, 29
  %v2108 = vpop.permute.xlu0 %2107
  %2109 = vrot.lane.b32.xlu0 %v2092, 29
  %v2110 = vpop.permute.xlu0 %2109
  %2111 = vrot.lane.b32.xlu0 %v2093, 29
  %v2112 = vpop.permute.xlu0 %2111
  %2113 = vrot.lane.b32.xlu0 %v2094, 29
  %v2114 = vpop.permute.xlu0 %2113
  %2115 = vrot.lane.b32.xlu0 %v2095, 29
  %v2116 = vpop.permute.xlu0 %2115
  %v2117 = vsel %vm644, %v2104, %v2106
  %v2118 = vsel %vm644, %v2106, %v2108
  %v2119 = vsel %vm644, %v2108, %v2110
  %v2120 = vsel %vm644, %v2110, %v2112
  %v2121 = vsel %vm644, %v2112, %v2114
  %v2122 = vsel %vm644, %v2114, %v2116
  %2130 = vst [vmem:[%s5 + $0x70] sm:$0xff] %v2117
  %2131 = vst [vmem:[%s5 + $0x78] sm:$0xff] %v2118
  %2132 = vst [vmem:[%s5 + $0x80] sm:$0xff] %v2119
  %2133 = vst [vmem:[%s5 + $0x88] sm:$0xff] %v2120
  %2134 = vst [vmem:[%s5 + $0x90] sm:$0xff] %v2121
  %2135 = vst [vmem:[%s5 + $0x98] sm:$0xff] %v2122
  %2136 = vst.msk [vmem:[%s5 + $0xa0] sm:$0xff] %vm49, %v2116
  // Predicated region
  $region22: #{relu_dwconv_bn.1} parent=0 // pred_check
    _
  $region23: #{relu_dwconv_bn.1} parent=0 // pred_check_branch
    %2138 = sbr.rel (0) target = $region25
  $region24: #{relu_dwconv_bn.1} parent=0 // pred_region
    _
  $region25: #{relu_dwconv_bn.1} parent=0 // pred_fallthru
    _
  // Predicated region
  $region26: #{relu_dwconv_bn.1} parent=0 // pred_check
    _
  $region27: #{relu_dwconv_bn.1} parent=0 // pred_check_branch
    %2140 = sbr.rel (0) target = $region29
  $region28: #{relu_dwconv_bn.1} parent=0 // pred_region
    _
  $region29: #{relu_dwconv_bn.1} parent=0 // pred_fallthru
    _

</llo_original>
